<compile_context>
chip_gen: v7x
topology: tpu7x:2x2x1
jax: 0.10.0
libtpu: 0.0.40
codegen_flags: <defaults>
</compile_context>

<pallas_src>
import math

import jax
import jax.numpy as jnp
import numpy as np
from jax.experimental import pallas as pl
from jax.experimental.pallas import tpu as pltpu

# ---------------- config (small, consistent with the module) ----------------
B = 2            # batch
T = 8            # sequence length == n_ctx
C = 32           # n_embd
N_HEAD = 4
HD = C // N_HEAD
BT = B * T       # merged (batch, seq) row axis used inside the kernel
EPS = 1e-5       # layer_norm_epsilon
GELU_K = math.sqrt(2.0 / math.pi)

# ---- packed f32 parameter-slab layout: one (R_TOTAL, 128) array == one DMA ----
LANES = 128
R_W1 = 0                  # rows [0, C):   cols 0:3C = c_attn W, cols 3C:4C = attn c_proj W
R_FC = C                  # rows [C, 2C):  mlp c_fc W  (C, 4C), full 128 lanes
R_MP = 2 * C              # rows [2C, 6C): mlp c_proj W (4C, C) in cols 0:C
R_VEC = R_MP + 4 * C      # 4 rows of packed vectors (ln scales/biases, proj biases)
R_MASK = R_VEC + 8        # rows [R_MASK, R_MASK+BT): mask b in cols 0:BT, -1e4*(1-b) in cols BT:2BT
R_TOTAL = R_MASK + BT     # 216 rows (multiple of 8)


def _layernorm(v, w, b):
    mu = jnp.mean(v, axis=-1, keepdims=True)
    var = jnp.mean((v - mu) ** 2, axis=-1, keepdims=True)
    return (v - mu) * jax.lax.rsqrt(var + EPS) * w + b


def _gelu(x):
    return 0.5 * x * (1.0 + jnp.tanh(GELU_K * (x + 0.044715 * x * x * x)))


def block_kernel(x_ref, w_ref, out_ref):
    x2d = x_ref[...].astype(jnp.float32)                          # (BT, C)

    # ---- static carve-outs from the packed parameter slab (free ref slices) ----
    wqkv = w_ref[R_W1:R_W1 + C, 0:3 * C]                          # (C, 3C)
    wfc = w_ref[R_FC:R_FC + C, :]                                 # (C, 4C)
    wmp = w_ref[R_MP:R_MP + 4 * C, 0:C]                           # (4C, C)
    ln1w = w_ref[R_VEC:R_VEC + 1, 0:C]
    ln1b = w_ref[R_VEC:R_VEC + 1, C:2 * C]
    ln2w = w_ref[R_VEC:R_VEC + 1, 2 * C:3 * C]
    ln2b = w_ref[R_VEC:R_VEC + 1, 3 * C:4 * C]
    bqkv = w_ref[R_VEC + 1:R_VEC + 2, 0:3 * C]
    bap = w_ref[R_VEC + 1:R_VEC + 2, 3 * C:4 * C]
    bfc = w_ref[R_VEC + 2:R_VEC + 3, :]
    bmp = w_ref[R_VEC + 3:R_VEC + 4, 0:C]
    maskb = w_ref[R_MASK:R_MASK + BT, 0:BT]                       # (BT, BT) tril & same-batch
    maskneg = w_ref[R_MASK:R_MASK + BT, BT:2 * BT]                # (BT, BT) = -1e4*(1-b)

    # ---- LN1 + fused QKV projection: single (BT,C)x(C,3C) MXU matmul ----
    h1 = _layernorm(x2d, ln1w, ln1b)
    qkv = jnp.dot(h1, wqkv, preferred_element_type=jnp.float32) + bqkv    # (BT, 3C)
    k2d = qkv[:, C:2 * C]                                         # present keys   (BT, C)
    v2d = qkv[:, 2 * C:3 * C]                                     # present values (BT, C)

    # ---- attention: per-head 2-D matmuls on the merged B*T row axis.
    # The precomputed block-diagonal causal mask kills cross-batch pairs, so no
    # (B,H,T,HD) transposes, broadcasts or concatenations are needed in-kernel.
    a = None
    for h in range(N_HEAD):
        qh = qkv[:, h * HD:(h + 1) * HD]                          # (BT, HD)
        kh = qkv[:, C + h * HD:C + (h + 1) * HD]                  # (BT, HD)
        vh = qkv[:, 2 * C + h * HD:2 * C + (h + 1) * HD]          # (BT, HD)
        s = jax.lax.dot_general(qh, kh, (((1,), (1,)), ((), ())),
                                preferred_element_type=jnp.float32)       # q @ k^T, (BT, BT)
        s = s * maskb + maskneg                                   # == w*b - 1e4*(1-b)
        # no max-subtraction: allowed scores are O(0.1); masked ones exp-underflow to 0
        e = jnp.exp(s)
        p = e * pl.reciprocal(jnp.sum(e, axis=-1, keepdims=True), approx=True)
        ctx = jnp.dot(p, vh, preferred_element_type=jnp.float32)          # (BT, HD)
        waph = w_ref[R_W1 + h * HD:R_W1 + (h + 1) * HD, 3 * C:4 * C]      # (HD, C) c_proj slice
        part = jnp.dot(ctx, waph, preferred_element_type=jnp.float32)     # (BT, C)
        a = part if a is None else a + part
    a = a + bap

    # ---- residual 1, LN2, MLP, residual 2 ----
    x2 = x2d + a
    h2 = _layernorm(x2, ln2w, ln2b)
    fc = jnp.dot(h2, wfc, preferred_element_type=jnp.float32) + bfc       # (BT, 4C)
    m = jnp.dot(_gelu(fc), wmp, preferred_element_type=jnp.float32) + bmp # (BT, C)
    x3 = x2 + m

    # ---- single lane-dense (BT, 128) store: [hidden | key | value | 0-pad] ----
    pad = jnp.zeros((BT, C), jnp.float32)
    out_ref[...] = jnp.concatenate([x3, k2d, v2d, pad], axis=1).astype(out_ref.dtype)


def pack_params(params):
    """One-time packing of all Block parameters (plus the fused causal/batch mask)
    into a single lane-dense f32 slab -> one HBM->VMEM DMA per kernel call."""
    (ln1w, ln1b, wqkv, bqkv, wap, bap, ln2w, ln2b, wfc, bfc, wmp, bmp) = params
    slab = np.zeros((R_TOTAL, LANES), np.float32)
    slab[R_W1:R_W1 + C, 0:3 * C] = np.asarray(wqkv)
    slab[R_W1:R_W1 + C, 3 * C:4 * C] = np.asarray(wap)
    slab[R_FC:R_FC + C, 0:4 * C] = np.asarray(wfc)
    slab[R_MP:R_MP + 4 * C, 0:C] = np.asarray(wmp)
    slab[R_VEC, 0:C] = np.asarray(ln1w).reshape(-1)
    slab[R_VEC, C:2 * C] = np.asarray(ln1b).reshape(-1)
    slab[R_VEC, 2 * C:3 * C] = np.asarray(ln2w).reshape(-1)
    slab[R_VEC, 3 * C:4 * C] = np.asarray(ln2b).reshape(-1)
    slab[R_VEC + 1, 0:3 * C] = np.asarray(bqkv).reshape(-1)
    slab[R_VEC + 1, 3 * C:4 * C] = np.asarray(bap).reshape(-1)
    slab[R_VEC + 2, 0:4 * C] = np.asarray(bfc).reshape(-1)
    slab[R_VEC + 3, 0:C] = np.asarray(bmp).reshape(-1)
    # fused (same-batch AND causal) mask over the merged B*T axis
    r = np.arange(BT)
    b = ((r[:, None] // T == r[None, :] // T) &
         (r[None, :] % T <= r[:, None] % T)).astype(np.float32)
    slab[R_MASK:R_MASK + BT, 0:BT] = b
    slab[R_MASK:R_MASK + BT, BT:2 * BT] = -10000.0 * (1.0 - b)
    return jnp.asarray(slab)


@jax.jit
def gpt2_block(x, slab):
    x2d = x.reshape(BT, C)           # free contiguous reshape

    # static cost hint so XLA schedules this microsecond-scale call tightly
    flops = (2 * BT * C * 3 * C
             + N_HEAD * (2 * BT * HD * BT + 2 * BT * BT * HD + 2 * BT * HD * C)
             + 2 * BT * C * 4 * C + 2 * BT * 4 * C * C)
    bytes_accessed = (BT * C + R_TOTAL * LANES + BT * 4 * C) * 4
    transcendentals = N_HEAD * BT * BT + BT * 4 * C + 2 * BT

    vmem = pl.BlockSpec(memory_space=pltpu.MemorySpace.VMEM)
    out = pl.pallas_call(
        block_kernel,
        out_shape=jax.ShapeDtypeStruct((BT, 4 * C), jnp.float32),
        in_specs=[vmem, vmem],
        out_specs=vmem,
        cost_estimate=pl.CostEstimate(flops=flops,
                                      transcendentals=transcendentals,
                                      bytes_accessed=bytes_accessed),
    )(x2d, slab)

    hidden = out[:, 0:C].reshape(B, T, C).astype(x.dtype)
    # present = stack((key.transpose(-2,-1), value)) -> (2, B, H, T, HD); the cheap
    # head split/transpose is XLA work outside the kernel.
    to_heads = lambda t: t.reshape(B, T, N_HEAD, HD).transpose(0, 2, 1, 3)
    k = to_heads(out[:, C:2 * C]).astype(x.dtype)
    v = to_heads(out[:, 2 * C:3 * C]).astype(x.dtype)
    present = jnp.stack([k, v], axis=0)
    return hidden, present


# ------------------------- pure-JAX reference ------------------------------
def reference_block(x, params):
    (ln1w, ln1b, wqkv, bqkv, wap, bap, ln2w, ln2b, wfc, bfc, wmp, bmp) = params
    ln = lambda v, w, b: _layernorm(v, w[0], b[0])
    h = ln(x, ln1w, ln1b)
    qkv = h @ wqkv + bqkv[0]
    q, k, v = jnp.split(qkv, 3, axis=-1)
    split = lambda t: t.reshape(B, T, N_HEAD, HD).transpose(0, 2, 1, 3)
    qh, kh, vh = split(q), split(k), split(v)
    w = jnp.einsum('bhqd,bhkd->bhqk', qh, kh)
    bmask = jnp.tril(jnp.ones((T, T), jnp.float32))[None, None]
    w = w * bmask - 10000.0 * (1 - bmask)
    p = jax.nn.softmax(w, axis=-1)
    a = jnp.einsum('bhqk,bhkd->bhqd', p, vh)
    a = a.transpose(0, 2, 1, 3).reshape(B, T, C)
    a = a @ wap + bap[0]
    x2 = x + a
    h2 = ln(x2, ln2w, ln2b)
    m = _gelu(h2 @ wfc + bfc[0]) @ wmp + bmp[0]
    x3 = x2 + m
    present = jnp.stack([kh, vh], axis=0)
    return x3, present


def init_params(key):
    ks = jax.random.split(key, 4)
    std = 0.02
    ln1w = jnp.ones((1, C), jnp.float32)
    ln1b = jnp.zeros((1, C), jnp.float32)
    wqkv = std * jax.random.normal(ks[0], (C, 3 * C), jnp.float32)
    bqkv = jnp.zeros((1, 3 * C), jnp.float32)
    wap = std * jax.random.normal(ks[1], (C, C), jnp.float32)
    bap = jnp.zeros((1, C), jnp.float32)
    ln2w = jnp.ones((1, C), jnp.float32)
    ln2b = jnp.zeros((1, C), jnp.float32)
    wfc = std * jax.random.normal(ks[2], (C, 4 * C), jnp.float32)
    bfc = jnp.zeros((1, 4 * C), jnp.float32)
    wmp = std * jax.random.normal(ks[3], (4 * C, C), jnp.float32)
    bmp = jnp.zeros((1, C), jnp.float32)
    return (ln1w, ln1b, wqkv, bqkv, wap, bap, ln2w, ln2b, wfc, bfc, wmp, bmp)


if __name__ == "__main__":
    key = jax.random.PRNGKey(0)
    kx, kp = jax.random.split(key)
    x = jax.random.normal(kx, (B, T, C), jnp.float32)
    params = init_params(kp)

    slab = pack_params(params)   # one-time packing, hoisted out of the call path

    x_out, present = gpt2_block(x, slab)
    jax.block_until_ready((x_out, present))

    x_ref, present_ref = reference_block(x, params)
    # Tolerance 1e-3 accommodates the EUP approximate reciprocal in the softmax
    # (and the dropped max-subtraction, which is an O(1e-7) effect here).
    np.testing.assert_allclose(np.asarray(x_out), np.asarray(x_ref),
                               rtol=1e-3, atol=1e-3)
    np.testing.assert_allclose(np.asarray(present), np.asarray(present_ref),
                               rtol=1e-3, atol=1e-3)
    print("KERNEL_OK")
</pallas_src>

<mosaic_0001>
module attributes {stable_mosaic.version = 11 : i64} {
  func.func @block_kernel(%arg0: memref<16x32xf32, #tpu.memory_space<vmem>>, %arg1: memref<216x128xf32, #tpu.memory_space<vmem>>, %arg2: memref<16x128xf32, #tpu.memory_space<vmem>>) attributes {dimension_semantics = [], scalar_prefetch = 0 : i64, scratch_operands = 0 : i64, tpu.core_type = #tpu.core_type<tc>} {
    %c0 = arith.constant 0 : index
    %c0_0 = arith.constant 0 : index
    %0 = vector.load %arg0[%c0, %c0_0] : memref<16x32xf32, #tpu.memory_space<vmem>>, vector<16x32xf32>
    %c0_1 = arith.constant 0 : index
    %c0_2 = arith.constant 0 : index
    %1 = vector.load %arg1[%c0_1, %c0_2] : memref<216x128xf32, #tpu.memory_space<vmem>>, vector<32x96xf32>
    %c32 = arith.constant 32 : index
    %c0_3 = arith.constant 0 : index
    %2 = vector.load %arg1[%c32, %c0_3] : memref<216x128xf32, #tpu.memory_space<vmem>>, vector<32x128xf32>
    %c64 = arith.constant 64 : index
    %c0_4 = arith.constant 0 : index
    %3 = vector.load %arg1[%c64, %c0_4] : memref<216x128xf32, #tpu.memory_space<vmem>>, vector<128x32xf32>
    %c192 = arith.constant 192 : index
    %c0_5 = arith.constant 0 : index
    %4 = vector.load %arg1[%c192, %c0_5] : memref<216x128xf32, #tpu.memory_space<vmem>>, vector<1x32xf32>
    %c192_6 = arith.constant 192 : index
    %c32_7 = arith.constant 32 : index
    %5 = vector.load %arg1[%c192_6, %c32_7] : memref<216x128xf32, #tpu.memory_space<vmem>>, vector<1x32xf32>
    %c192_8 = arith.constant 192 : index
    %c64_9 = arith.constant 64 : index
    %6 = vector.load %arg1[%c192_8, %c64_9] : memref<216x128xf32, #tpu.memory_space<vmem>>, vector<1x32xf32>
    %c192_10 = arith.constant 192 : index
    %c96 = arith.constant 96 : index
    %7 = vector.load %arg1[%c192_10, %c96] : memref<216x128xf32, #tpu.memory_space<vmem>>, vector<1x32xf32>
    %c193 = arith.constant 193 : index
    %c0_11 = arith.constant 0 : index
    %8 = vector.load %arg1[%c193, %c0_11] : memref<216x128xf32, #tpu.memory_space<vmem>>, vector<1x96xf32>
    %c193_12 = arith.constant 193 : index
    %c96_13 = arith.constant 96 : index
    %9 = vector.load %arg1[%c193_12, %c96_13] : memref<216x128xf32, #tpu.memory_space<vmem>>, vector<1x32xf32>
    %c194 = arith.constant 194 : index
    %c0_14 = arith.constant 0 : index
    %10 = vector.load %arg1[%c194, %c0_14] : memref<216x128xf32, #tpu.memory_space<vmem>>, vector<1x128xf32>
    %c195 = arith.constant 195 : index
    %c0_15 = arith.constant 0 : index
    %11 = vector.load %arg1[%c195, %c0_15] : memref<216x128xf32, #tpu.memory_space<vmem>>, vector<1x32xf32>
    %c200 = arith.constant 200 : index
    %c0_16 = arith.constant 0 : index
    %12 = vector.load %arg1[%c200, %c0_16] : memref<216x128xf32, #tpu.memory_space<vmem>>, vector<16x16xf32>
    %c200_17 = arith.constant 200 : index
    %c16 = arith.constant 16 : index
    %13 = vector.load %arg1[%c200_17, %c16] : memref<216x128xf32, #tpu.memory_space<vmem>>, vector<16x16xf32>
    %cst = arith.constant dense<0.000000e+00> : vector<16xf32>
    %14 = vector.multi_reduction <add>, %0, %cst [1] : vector<16x32xf32> to vector<16xf32>
    %15 = vector.shape_cast %14 : vector<16xf32> to vector<16x1xf32>
    %cst_18 = arith.constant 3.200000e+01 : f32
    %16 = vector.broadcast %cst_18 : f32 to vector<16x1xf32>
    %17 = arith.divf %15, %16 : vector<16x1xf32>
    %18 = vector.broadcast %17 : vector<16x1xf32> to vector<16x32xf32>
    %19 = arith.subf %0, %18 : vector<16x32xf32>
    %20 = arith.mulf %19, %19 : vector<16x32xf32>
    %cst_19 = arith.constant dense<0.000000e+00> : vector<16xf32>
    %21 = vector.multi_reduction <add>, %20, %cst_19 [1] : vector<16x32xf32> to vector<16xf32>
    %22 = vector.shape_cast %21 : vector<16xf32> to vector<16x1xf32>
    %cst_20 = arith.constant 3.200000e+01 : f32
    %23 = vector.broadcast %cst_20 : f32 to vector<16x1xf32>
    %24 = arith.divf %22, %23 : vector<16x1xf32>
    %25 = vector.broadcast %17 : vector<16x1xf32> to vector<16x32xf32>
    %26 = arith.subf %0, %25 : vector<16x32xf32>
    %cst_21 = arith.constant 9.99999974E-6 : f32
    %27 = vector.broadcast %cst_21 : f32 to vector<16x1xf32>
    %28 = arith.addf %24, %27 : vector<16x1xf32>
    %29 = math.rsqrt %28 : vector<16x1xf32>
    %30 = vector.broadcast %29 : vector<16x1xf32> to vector<16x32xf32>
    %31 = arith.mulf %26, %30 : vector<16x32xf32>
    %32 = vector.broadcast %4 : vector<1x32xf32> to vector<16x32xf32>
    %33 = arith.mulf %31, %32 : vector<16x32xf32>
    %34 = vector.broadcast %5 : vector<1x32xf32> to vector<16x32xf32>
    %35 = arith.addf %33, %34 : vector<16x32xf32>
    %cst_22 = arith.constant dense<0.000000e+00> : vector<16x96xf32>
    %36 = tpu.matmul %35, %1, %cst_22 {dimension_numbers = #tpu.dot_dimension_numbers<[1], [0], [0], [1], [0, 0, 1, 1], [], []>} : vector<16x32xf32>, vector<32x96xf32>, vector<16x96xf32> -> vector<16x96xf32>
    %37 = vector.broadcast %8 : vector<1x96xf32> to vector<16x96xf32>
    %38 = arith.addf %36, %37 : vector<16x96xf32>
    %39 = vector.extract_strided_slice %38 {offsets = [0, 32], sizes = [16, 32], strides = [1, 1]} : vector<16x96xf32> to vector<16x32xf32>
    %40 = vector.extract_strided_slice %38 {offsets = [0, 64], sizes = [16, 32], strides = [1, 1]} : vector<16x96xf32> to vector<16x32xf32>
    %41 = vector.extract_strided_slice %38 {offsets = [0, 0], sizes = [16, 8], strides = [1, 1]} : vector<16x96xf32> to vector<16x8xf32>
    %42 = vector.extract_strided_slice %38 {offsets = [0, 32], sizes = [16, 8], strides = [1, 1]} : vector<16x96xf32> to vector<16x8xf32>
    %43 = vector.extract_strided_slice %38 {offsets = [0, 64], sizes = [16, 8], strides = [1, 1]} : vector<16x96xf32> to vector<16x8xf32>
    %cst_23 = arith.constant dense<0.000000e+00> : vector<16x16xf32>
    %44 = tpu.matmul %41, %42, %cst_23 {dimension_numbers = #tpu.dot_dimension_numbers<[1], [1], [0], [0], [0, 0, 1, 0], [], []>} : vector<16x8xf32>, vector<16x8xf32>, vector<16x16xf32> -> vector<16x16xf32>
    %45 = arith.mulf %44, %12 : vector<16x16xf32>
    %46 = arith.addf %45, %13 : vector<16x16xf32>
    %47 = math.exp %46 : vector<16x16xf32>
    %cst_24 = arith.constant dense<0.000000e+00> : vector<16xf32>
    %48 = vector.multi_reduction <add>, %47, %cst_24 [1] : vector<16x16xf32> to vector<16xf32>
    %49 = vector.shape_cast %48 : vector<16xf32> to vector<16x1xf32>
    %50 = tpu.reciprocal %49 {approx = true} : vector<16x1xf32> -> vector<16x1xf32>
    %51 = vector.broadcast %50 : vector<16x1xf32> to vector<16x16xf32>
    %52 = arith.mulf %47, %51 : vector<16x16xf32>
    %cst_25 = arith.constant dense<0.000000e+00> : vector<16x8xf32>
    %53 = tpu.matmul %52, %43, %cst_25 {dimension_numbers = #tpu.dot_dimension_numbers<[1], [0], [0], [1], [0, 0, 1, 1], [], []>} : vector<16x16xf32>, vector<16x8xf32>, vector<16x8xf32> -> vector<16x8xf32>
    %c0_26 = arith.constant 0 : index
    %c96_27 = arith.constant 96 : index
    %54 = vector.load %arg1[%c0_26, %c96_27] : memref<216x128xf32, #tpu.memory_space<vmem>>, vector<8x32xf32>
    %cst_28 = arith.constant dense<0.000000e+00> : vector<16x32xf32>
    %55 = tpu.matmul %53, %54, %cst_28 {dimension_numbers = #tpu.dot_dimension_numbers<[1], [0], [0], [1], [0, 0, 1, 1], [], []>} : vector<16x8xf32>, vector<8x32xf32>, vector<16x32xf32> -> vector<16x32xf32>
    %56 = vector.extract_strided_slice %38 {offsets = [0, 8], sizes = [16, 8], strides = [1, 1]} : vector<16x96xf32> to vector<16x8xf32>
    %57 = vector.extract_strided_slice %38 {offsets = [0, 40], sizes = [16, 8], strides = [1, 1]} : vector<16x96xf32> to vector<16x8xf32>
    %58 = vector.extract_strided_slice %38 {offsets = [0, 72], sizes = [16, 8], strides = [1, 1]} : vector<16x96xf32> to vector<16x8xf32>
    %cst_29 = arith.constant dense<0.000000e+00> : vector<16x16xf32>
    %59 = tpu.matmul %56, %57, %cst_29 {dimension_numbers = #tpu.dot_dimension_numbers<[1], [1], [0], [0], [0, 0, 1, 0], [], []>} : vector<16x8xf32>, vector<16x8xf32>, vector<16x16xf32> -> vector<16x16xf32>
    %60 = arith.mulf %59, %12 : vector<16x16xf32>
    %61 = arith.addf %60, %13 : vector<16x16xf32>
    %62 = math.exp %61 : vector<16x16xf32>
    %cst_30 = arith.constant dense<0.000000e+00> : vector<16xf32>
    %63 = vector.multi_reduction <add>, %62, %cst_30 [1] : vector<16x16xf32> to vector<16xf32>
    %64 = vector.shape_cast %63 : vector<16xf32> to vector<16x1xf32>
    %65 = tpu.reciprocal %64 {approx = true} : vector<16x1xf32> -> vector<16x1xf32>
    %66 = vector.broadcast %65 : vector<16x1xf32> to vector<16x16xf32>
    %67 = arith.mulf %62, %66 : vector<16x16xf32>
    %cst_31 = arith.constant dense<0.000000e+00> : vector<16x8xf32>
    %68 = tpu.matmul %67, %58, %cst_31 {dimension_numbers = #tpu.dot_dimension_numbers<[1], [0], [0], [1], [0, 0, 1, 1], [], []>} : vector<16x16xf32>, vector<16x8xf32>, vector<16x8xf32> -> vector<16x8xf32>
    %c8 = arith.constant 8 : index
    %c96_32 = arith.constant 96 : index
    %69 = vector.load %arg1[%c8, %c96_32] : memref<216x128xf32, #tpu.memory_space<vmem>>, vector<8x32xf32>
    %cst_33 = arith.constant dense<0.000000e+00> : vector<16x32xf32>
    %70 = tpu.matmul %68, %69, %cst_33 {dimension_numbers = #tpu.dot_dimension_numbers<[1], [0], [0], [1], [0, 0, 1, 1], [], []>} : vector<16x8xf32>, vector<8x32xf32>, vector<16x32xf32> -> vector<16x32xf32>
    %71 = arith.addf %55, %70 : vector<16x32xf32>
    %72 = vector.extract_strided_slice %38 {offsets = [0, 16], sizes = [16, 8], strides = [1, 1]} : vector<16x96xf32> to vector<16x8xf32>
    %73 = vector.extract_strided_slice %38 {offsets = [0, 48], sizes = [16, 8], strides = [1, 1]} : vector<16x96xf32> to vector<16x8xf32>
    %74 = vector.extract_strided_slice %38 {offsets = [0, 80], sizes = [16, 8], strides = [1, 1]} : vector<16x96xf32> to vector<16x8xf32>
    %cst_34 = arith.constant dense<0.000000e+00> : vector<16x16xf32>
    %75 = tpu.matmul %72, %73, %cst_34 {dimension_numbers = #tpu.dot_dimension_numbers<[1], [1], [0], [0], [0, 0, 1, 0], [], []>} : vector<16x8xf32>, vector<16x8xf32>, vector<16x16xf32> -> vector<16x16xf32>
    %76 = arith.mulf %75, %12 : vector<16x16xf32>
    %77 = arith.addf %76, %13 : vector<16x16xf32>
    %78 = math.exp %77 : vector<16x16xf32>
    %cst_35 = arith.constant dense<0.000000e+00> : vector<16xf32>
    %79 = vector.multi_reduction <add>, %78, %cst_35 [1] : vector<16x16xf32> to vector<16xf32>
    %80 = vector.shape_cast %79 : vector<16xf32> to vector<16x1xf32>
    %81 = tpu.reciprocal %80 {approx = true} : vector<16x1xf32> -> vector<16x1xf32>
    %82 = vector.broadcast %81 : vector<16x1xf32> to vector<16x16xf32>
    %83 = arith.mulf %78, %82 : vector<16x16xf32>
    %cst_36 = arith.constant dense<0.000000e+00> : vector<16x8xf32>
    %84 = tpu.matmul %83, %74, %cst_36 {dimension_numbers = #tpu.dot_dimension_numbers<[1], [0], [0], [1], [0, 0, 1, 1], [], []>} : vector<16x16xf32>, vector<16x8xf32>, vector<16x8xf32> -> vector<16x8xf32>
    %c16_37 = arith.constant 16 : index
    %c96_38 = arith.constant 96 : index
    %85 = vector.load %arg1[%c16_37, %c96_38] : memref<216x128xf32, #tpu.memory_space<vmem>>, vector<8x32xf32>
    %cst_39 = arith.constant dense<0.000000e+00> : vector<16x32xf32>
    %86 = tpu.matmul %84, %85, %cst_39 {dimension_numbers = #tpu.dot_dimension_numbers<[1], [0], [0], [1], [0, 0, 1, 1], [], []>} : vector<16x8xf32>, vector<8x32xf32>, vector<16x32xf32> -> vector<16x32xf32>
    %87 = arith.addf %71, %86 : vector<16x32xf32>
    %88 = vector.extract_strided_slice %38 {offsets = [0, 24], sizes = [16, 8], strides = [1, 1]} : vector<16x96xf32> to vector<16x8xf32>
    %89 = vector.extract_strided_slice %38 {offsets = [0, 56], sizes = [16, 8], strides = [1, 1]} : vector<16x96xf32> to vector<16x8xf32>
    %90 = vector.extract_strided_slice %38 {offsets = [0, 88], sizes = [16, 8], strides = [1, 1]} : vector<16x96xf32> to vector<16x8xf32>
    %cst_40 = arith.constant dense<0.000000e+00> : vector<16x16xf32>
    %91 = tpu.matmul %88, %89, %cst_40 {dimension_numbers = #tpu.dot_dimension_numbers<[1], [1], [0], [0], [0, 0, 1, 0], [], []>} : vector<16x8xf32>, vector<16x8xf32>, vector<16x16xf32> -> vector<16x16xf32>
    %92 = arith.mulf %91, %12 : vector<16x16xf32>
    %93 = arith.addf %92, %13 : vector<16x16xf32>
    %94 = math.exp %93 : vector<16x16xf32>
    %cst_41 = arith.constant dense<0.000000e+00> : vector<16xf32>
    %95 = vector.multi_reduction <add>, %94, %cst_41 [1] : vector<16x16xf32> to vector<16xf32>
    %96 = vector.shape_cast %95 : vector<16xf32> to vector<16x1xf32>
    %97 = tpu.reciprocal %96 {approx = true} : vector<16x1xf32> -> vector<16x1xf32>
    %98 = vector.broadcast %97 : vector<16x1xf32> to vector<16x16xf32>
    %99 = arith.mulf %94, %98 : vector<16x16xf32>
    %cst_42 = arith.constant dense<0.000000e+00> : vector<16x8xf32>
    %100 = tpu.matmul %99, %90, %cst_42 {dimension_numbers = #tpu.dot_dimension_numbers<[1], [0], [0], [1], [0, 0, 1, 1], [], []>} : vector<16x16xf32>, vector<16x8xf32>, vector<16x8xf32> -> vector<16x8xf32>
    %c24 = arith.constant 24 : index
    %c96_43 = arith.constant 96 : index
    %101 = vector.load %arg1[%c24, %c96_43] : memref<216x128xf32, #tpu.memory_space<vmem>>, vector<8x32xf32>
    %cst_44 = arith.constant dense<0.000000e+00> : vector<16x32xf32>
    %102 = tpu.matmul %100, %101, %cst_44 {dimension_numbers = #tpu.dot_dimension_numbers<[1], [0], [0], [1], [0, 0, 1, 1], [], []>} : vector<16x8xf32>, vector<8x32xf32>, vector<16x32xf32> -> vector<16x32xf32>
    %103 = arith.addf %87, %102 : vector<16x32xf32>
    %104 = vector.broadcast %9 : vector<1x32xf32> to vector<16x32xf32>
    %105 = arith.addf %103, %104 : vector<16x32xf32>
    %106 = arith.addf %0, %105 : vector<16x32xf32>
    %cst_45 = arith.constant dense<0.000000e+00> : vector<16xf32>
    %107 = vector.multi_reduction <add>, %106, %cst_45 [1] : vector<16x32xf32> to vector<16xf32>
    %108 = vector.shape_cast %107 : vector<16xf32> to vector<16x1xf32>
    %cst_46 = arith.constant 3.200000e+01 : f32
    %109 = vector.broadcast %cst_46 : f32 to vector<16x1xf32>
    %110 = arith.divf %108, %109 : vector<16x1xf32>
    %111 = vector.broadcast %110 : vector<16x1xf32> to vector<16x32xf32>
    %112 = arith.subf %106, %111 : vector<16x32xf32>
    %113 = arith.mulf %112, %112 : vector<16x32xf32>
    %cst_47 = arith.constant dense<0.000000e+00> : vector<16xf32>
    %114 = vector.multi_reduction <add>, %113, %cst_47 [1] : vector<16x32xf32> to vector<16xf32>
    %115 = vector.shape_cast %114 : vector<16xf32> to vector<16x1xf32>
    %cst_48 = arith.constant 3.200000e+01 : f32
    %116 = vector.broadcast %cst_48 : f32 to vector<16x1xf32>
    %117 = arith.divf %115, %116 : vector<16x1xf32>
    %118 = vector.broadcast %110 : vector<16x1xf32> to vector<16x32xf32>
    %119 = arith.subf %106, %118 : vector<16x32xf32>
    %cst_49 = arith.constant 9.99999974E-6 : f32
    %120 = vector.broadcast %cst_49 : f32 to vector<16x1xf32>
    %121 = arith.addf %117, %120 : vector<16x1xf32>
    %122 = math.rsqrt %121 : vector<16x1xf32>
    %123 = vector.broadcast %122 : vector<16x1xf32> to vector<16x32xf32>
    %124 = arith.mulf %119, %123 : vector<16x32xf32>
    %125 = vector.broadcast %6 : vector<1x32xf32> to vector<16x32xf32>
    %126 = arith.mulf %124, %125 : vector<16x32xf32>
    %127 = vector.broadcast %7 : vector<1x32xf32> to vector<16x32xf32>
    %128 = arith.addf %126, %127 : vector<16x32xf32>
    %cst_50 = arith.constant dense<0.000000e+00> : vector<16x128xf32>
    %129 = tpu.matmul %128, %2, %cst_50 {dimension_numbers = #tpu.dot_dimension_numbers<[1], [0], [0], [1], [0, 0, 1, 1], [], []>} : vector<16x32xf32>, vector<32x128xf32>, vector<16x128xf32> -> vector<16x128xf32>
    %130 = vector.broadcast %10 : vector<1x128xf32> to vector<16x128xf32>
    %131 = arith.addf %129, %130 : vector<16x128xf32>
    %cst_51 = arith.constant 5.000000e-01 : f32
    %132 = vector.broadcast %cst_51 : f32 to vector<16x128xf32>
    %133 = arith.mulf %132, %131 : vector<16x128xf32>
    %cst_52 = arith.constant 4.471500e-02 : f32
    %134 = vector.broadcast %cst_52 : f32 to vector<16x128xf32>
    %135 = arith.mulf %134, %131 : vector<16x128xf32>
    %136 = arith.mulf %135, %131 : vector<16x128xf32>
    %137 = arith.mulf %136, %131 : vector<16x128xf32>
    %138 = arith.addf %131, %137 : vector<16x128xf32>
    %cst_53 = arith.constant 0.797884583 : f32
    %139 = vector.broadcast %cst_53 : f32 to vector<16x128xf32>
    %140 = arith.mulf %139, %138 : vector<16x128xf32>
    %141 = math.tanh %140 : vector<16x128xf32>
    %cst_54 = arith.constant 1.000000e+00 : f32
    %142 = vector.broadcast %cst_54 : f32 to vector<16x128xf32>
    %143 = arith.addf %142, %141 : vector<16x128xf32>
    %144 = arith.mulf %133, %143 : vector<16x128xf32>
    %cst_55 = arith.constant dense<0.000000e+00> : vector<16x32xf32>
    %145 = tpu.matmul %144, %3, %cst_55 {dimension_numbers = #tpu.dot_dimension_numbers<[1], [0], [0], [1], [0, 0, 1, 1], [], []>} : vector<16x128xf32>, vector<128x32xf32>, vector<16x32xf32> -> vector<16x32xf32>
    %146 = vector.broadcast %11 : vector<1x32xf32> to vector<16x32xf32>
    %147 = arith.addf %145, %146 : vector<16x32xf32>
    %148 = arith.addf %106, %147 : vector<16x32xf32>
    %cst_56 = arith.constant 0.000000e+00 : f32
    %149 = vector.broadcast %cst_56 : f32 to vector<16x32xf32>
    %150 = tpu.concatenate %148, %39, %40, %149 in 1 : vector<16x32xf32>, vector<16x32xf32>, vector<16x32xf32>, vector<16x32xf32> -> vector<16x128xf32>
    %c0_57 = arith.constant 0 : index
    %c0_58 = arith.constant 0 : index
    %151 = vector.load %arg2[%c0_57, %c0_58] : memref<16x128xf32, #tpu.memory_space<vmem>>, vector<16x128xf32>
    tpu.vector_store %arg2[%c0_57, %c0_58], %150 {strides = array<i32>} : memref<16x128xf32, #tpu.memory_space<vmem>>, vector<16x128xf32>,
    return
  }
}

</mosaic_0001>

<llo_original>
// kernel: gpt2_block.1
$region0: #{gpt2_block.1}
  #allocation0 [shape = 'u32[]', space=smem, size = 0x4, offset = 0x4, fixed_abs, tag = 'smem constant byte address 0x4 - core index']
  #allocation1 [shape = 'u32[144,128]{1,0:T(1,128)}', space=vmem, size = 0x12000, scoped, tag = 'internal scratch']
  %s0 = inlined_call_operand.hbm [shape: f32[16,32], index: 0, kind: input, shape index: {}]
  %s1 = inlined_call_operand.hbm [shape: f32[216,128], index: 1, kind: input, shape index: {}]
  %s2 = inlined_call_operand.vmem [shape: f32[16,128], index: 2, kind: output, shape index: {}]
  %s3 = sld [smem:[#allocation0]]
  $region26: #{gpt2_block.1} parent=0
    _
  %s5 = ssub.s32 1, %s3
  %s6 = scalar_select 0, %s5, %s3
  $region1: #{gpt2_block.1} parent=0
    #allocation2 [shape = 'u8[8192]{0}', space=vmem, size = 0x2000, scoped, tag = 'input window, operand 0, single buffered']
    #allocation3 [shape = 's32[1]{0}', space=sflag, size = 0x4, scoped, tag = 'scoped memory for gpt2_block.1']
    #allocation4 [shape = 'u8[110592]{0}', space=vmem, size = 0x1b000, scoped, tag = 'input window, operand 1, single buffered']
    #allocation5 [shape = 's32[1]{0}', space=sflag, size = 0x4, scoped, tag = 'scoped memory for gpt2_block.1']
    %7 = vsyncpa [#allocation3], 0
    %8 = vsyncpa [#allocation5], 0
    // Predicated region
    $region2: #{gpt2_block.1} parent=1 // pred_check
      _
    $region3: #{gpt2_block.1} parent=1 // pred_check_branch
      %10 = sbr.rel (0) target = $region5
    $region4: #{gpt2_block.1} parent=1 // pred_region
      %s12 = ssub.s32 256, 256
      %13 = vsyncadd [#allocation3], %s12
      %s14 = sshll.u32 [#allocation2], 4
      %s15 = int_to_ptr.vmem [resolvable:$true] %s14
      %20 = dma.hbm_to_vmem [thread:$0]  %s0, 256, %s15, [#allocation3], 128, 128, 8
    $region5: #{gpt2_block.1} parent=1 // pred_fallthru
      _
    // Predicated region
    $region6: #{gpt2_block.1} parent=1 // pred_check
      _
    $region7: #{gpt2_block.1} parent=1 // pred_check_branch
      %22 = sbr.rel (0) target = $region9
    $region8: #{gpt2_block.1} parent=1 // pred_region
      %s24 = ssub.s32 3456, 3456
      %25 = vsyncadd [#allocation5], %s24
      %s26 = sshll.u32 [#allocation4], 4
      %s27 = int_to_ptr.vmem [resolvable:$true] %s26
      %32 = dma.hbm_to_vmem [thread:$0]  %s1, 3456, %s27, [#allocation5], 128, 128, 8
    $region9: #{gpt2_block.1} parent=1 // pred_fallthru
      _
    // Predicated region
    $region10: #{gpt2_block.1} parent=1 // pred_check
      _
    $region11: #{gpt2_block.1} parent=1 // pred_check_branch
      %34 = sbr.rel (0) target = $region13
    $region12: #{gpt2_block.1} parent=1 // pred_region
      %35 = dma.done [#allocation3], 256
    $region13: #{gpt2_block.1} parent=1 // pred_fallthru
      _
    // Predicated region
    $region14: #{gpt2_block.1} parent=1 // pred_check
      _
    $region15: #{gpt2_block.1} parent=1 // pred_check_branch
      %37 = sbr.rel (0) target = $region17
    $region16: #{gpt2_block.1} parent=1 // pred_region
      %38 = dma.done [#allocation5], 3456
    $region17: #{gpt2_block.1} parent=1 // pred_fallthru
      _
    %v39 = vld [vmem:[#allocation2] sm:$0xff]
    %v40 = vld [vmem:[#allocation2 + $0x8] sm:$0xff]
    %v41 = vld [vmem:[#allocation4] sm:$0xff]
    %v42 = vld [vmem:[#allocation4 + $0x8] sm:$0xff]
    %v43 = vld [vmem:[#allocation4 + $0x10] sm:$0xff]
    %v44 = vld [vmem:[#allocation4 + $0x18] sm:$0xff]
    %v45 = vld [vmem:[#allocation4 + $0x20] sm:$0xff]
    %v46 = vld [vmem:[#allocation4 + $0x28] sm:$0xff]
    %v47 = vld [vmem:[#allocation4 + $0x30] sm:$0xff]
    %v48 = vld [vmem:[#allocation4 + $0x38] sm:$0xff]
    %v49 = vld [vmem:[#allocation4 + $0x40] sm:$0xff]
    %v50 = vld [vmem:[#allocation4 + $0x48] sm:$0xff]
    %v51 = vld [vmem:[#allocation4 + $0x50] sm:$0xff]
    %v52 = vld [vmem:[#allocation4 + $0x58] sm:$0xff]
    %v53 = vld [vmem:[#allocation4 + $0x60] sm:$0xff]
    %v54 = vld [vmem:[#allocation4 + $0x68] sm:$0xff]
    %v55 = vld [vmem:[#allocation4 + $0x70] sm:$0xff]
    %v56 = vld [vmem:[#allocation4 + $0x78] sm:$0xff]
    %v57 = vld [vmem:[#allocation4 + $0x80] sm:$0xff]
    %v58 = vld [vmem:[#allocation4 + $0x88] sm:$0xff]
    %v59 = vld [vmem:[#allocation4 + $0x90] sm:$0xff]
    %v60 = vld [vmem:[#allocation4 + $0x98] sm:$0xff]
    %v61 = vld [vmem:[#allocation4 + $0xa0] sm:$0xff]
    %v62 = vld [vmem:[#allocation4 + $0xa8] sm:$0xff]
    %v63 = vld [vmem:[#allocation4 + $0xb0] sm:$0xff]
    %v64 = vld [vmem:[#allocation4 + $0xb8] sm:$0xff]
    %v65 = vld [vmem:[#allocation4 + $0xc0] sm:$0x1]
    %v66 = vld [vmem:[#allocation4 + $0xc1] sm:$0x1]
    %v67 = vld [vmem:[#allocation4 + $0xc2] sm:$0x1]
    %v68 = vld [vmem:[#allocation4 + $0xc3] sm:$0x1]
    %v69 = vld [vmem:[#allocation4 + $0xc8] sm:$0xff]
    %v70 = vld [vmem:[#allocation4 + $0xd0] sm:$0xff]
    %vm71 = vcmask 261120
    %v72 = vsel %vm71, %v39, 0.0
    %73 = vadd.xlane.f32.xlu0 %v72
    %v74 = vpop.xlane.xlu0 %73
    %v75 = vsel %vm71, %v40, 0.0
    %76 = vadd.xlane.f32.xlu0 %v75
    %v77 = vpop.xlane.xlu0 %76
    %v78 = vrcp.pop 32.0
    %v79 = vmul.f32 %v74, %v78
    %v80 = vmul.f32 %v77, %v78
    %v81 = vsub.f32 %v39, %v79
    %v82 = vsub.f32 %v40, %v80
    %v83 = vmul.f32 %v81, %v81
    %v84 = vmul.f32 %v82, %v82
    %v85 = vsel %vm71, %v83, 0.0
    %86 = vadd.xlane.f32.xlu0 %v85
    %v87 = vpop.xlane.xlu0 %86
    %v88 = vsel %vm71, %v84, 0.0
    %89 = vadd.xlane.f32.xlu0 %v88
    %v90 = vpop.xlane.xlu0 %89
    %v91 = vmul.f32 %v87, %v78
    %v92 = vmul.f32 %v90, %v78
    %v93 = vadd.f32 %v91, 1e-05
    %v94 = vadd.f32 %v92, 1e-05
    %v95 = vrsqrt.pop %v93
    %v96 = vrsqrt.pop %v94
    %v97 = vmul.f32 %v81, %v95
    %v98 = vmul.f32 %v82, %v96
    %v99 = vlaneseq
    %v100 = vshrl.u32 %v99, 7
    %v101 = vsub.s32 0, %v100
    %v102 = vrot.slane %v65, %v101
    %v103 = vmul.f32 %v97, %v102
    %v104 = vmul.f32 %v98, %v102
    %106 = vrot.lane.b32.xlu0 %v102, 96
    %v107 = vpop.permute.xlu0 %106
    %v109 = vadd.f32 %v103, %v107
    %v110 = vadd.f32 %v104, %v107
    %v111 = vlaneseq
    %v112 = vshrl.u32 %v111, 7
    %v113 = vsub.s32 0, %v112
    %v114 = vrot.slane %v66, %v113
    %v116 = vsel %vm71, %v109, 0
    %v119 = vsel %vm71, %v110, 0
    %121 = vmatprep.subr.mxu0 0.0
    %122 = vmatpush1.msra.mxu0 %v41
    %123 = vmatprep.subr.mxu0 0.0
    %124 = vmatpush1.msra.mxu0 %v42
    %125 = vmatprep.subr.mxu0 0.0
    %126 = vmatpush1.msra.mxu0 %v43
    %127 = vmatprep.subr.mxu0 0.0
    %128 = vmatpush1.msra.mxu0 %v44
    %129 = vmatprep.subr.mxu0 0.0
    %130 = vmatpush1.msra.mxu0 0.0
    %131 = vmatprep.subr.mxu0 0.0
    %132 = vmatpush1.msra.mxu0 0.0
    %133 = vmatprep.subr.mxu0 0.0
    %134 = vmatpush1.msra.mxu0 0.0
    %135 = vmatprep.subr.mxu0 0.0
    %136 = vmatpush1.msra.mxu0 0.0
    %137 = vmatprep.subr.mxu0 0.0
    %138 = vmatpush1.msra.mxu0 0.0
    %139 = vmatprep.subr.mxu0 0.0
    %140 = vmatpush1.msra.mxu0 0.0
    %141 = vmatprep.subr.mxu0 0.0
    %142 = vmatpush1.msra.mxu0 0.0
    %143 = vmatprep.subr.mxu0 0.0
    %144 = vmatpush1.msra.mxu0 0.0
    %145 = vmatprep.subr.mxu0 0.0
    %146 = vmatpush1.msra.mxu0 0.0
    %147 = vmatprep.subr.mxu0 0.0
    %148 = vmatpush1.msra.mxu0 0.0
    %149 = vmatprep.subr.mxu0 0.0
    %150 = vmatpush1.msra.mxu0 0.0
    %151 = vmatprep.subr.mxu0 0.0
    %152 = vmatpush1.msra.mxu0 0.0
    %153 = vmatprep.subr.mxu0 0.0
    %154 = vmatpush1.msra.mxu0 0.0
    %155 = vmatprep.subr.mxu0 0.0
    %156 = vmatpush1.msra.mxu0 0.0
    %157 = vmatprep.subr.mxu0 0.0
    %158 = vmatpush1.msra.mxu0 0.0
    %159 = vmatprep.subr.mxu0 0.0
    %160 = vmatpush1.msra.mxu0 0.0
    %161 = vmatprep.subr.mxu0 0.0
    %162 = vmatpush1.msra.mxu0 0.0
    %163 = vmatprep.subr.mxu0 0.0
    %164 = vmatpush1.msra.mxu0 0.0
    %165 = vmatprep.subr.mxu0 0.0
    %166 = vmatpush1.msra.mxu0 0.0
    %167 = vmatprep.subr.mxu0 0.0
    %168 = vmatpush1.msra.mxu0 0.0
    %169 = vmatprep.subr.mxu0 0.0
    %170 = vmatpush1.msra.mxu0 0.0
    %171 = vmatprep.subr.mxu0 0.0
    %172 = vmatpush1.msra.mxu0 0.0
    %173 = vmatprep.subr.mxu0 0.0
    %174 = vmatpush1.msra.mxu0 0.0
    %175 = vmatprep.subr.mxu0 0.0
    %176 = vmatpush1.msra.mxu0 0.0
    %177 = vmatprep.subr.mxu0 0.0
    %178 = vmatpush1.msra.mxu0 0.0
    %179 = vmatprep.subr.mxu0 0.0
    %180 = vmatpush1.msra.mxu0 0.0
    %181 = vmatprep.subr.mxu0 0.0
    %182 = vmatpush1.msra.mxu0 0.0
    %183 = vmatprep.subr.mxu0 0.0
    %184 = vmatpush1.msra.mxu0 0.0
    %185 = vmatprep.mubr.f32.mxu0 0.0
    %186 = vmatmul.mubr.f32.gmra.mrb[0].mxu0 %v116
    %v187 = vpop.f32.mrb[0].mxu0
    %v188 = vadd.f32 %v114, %v187
    %v189 = vpop.f32.mrb[0].mxu0
    %190 = vmatprep.mubr.f32.mxu0 0.0
    %191 = vmatmul.mubr.f32.gmra.mrb[0].mxu0 %v119
    %v192 = vpop.f32.mrb[0].mxu0
    %v193 = vadd.f32 %v114, %v192
    %v194 = vpop.f32.mrb[0].mxu0
    %195 = vdwg.mxu0
    %198 = vrot.lane.b32.xlu0 %v188, 96
    %v199 = vpop.permute.xlu0 %198
    %200 = vrot.lane.b32.xlu0 %v193, 96
    %v201 = vpop.permute.xlu0 %200
    %vm202 = vcmask 64512
    %v203 = vsel %vm202, %v188, 0
    %v205 = vsel %vm202, %v193, 0
    %v207 = vsel %vm202, %v199, 0
    %v209 = vsel %vm202, %v201, 0
    %211 = vmatprep.subr.mxu0 0.0
    %212 = vmatpush1.xpose.msra.mxu0 %v207
    %213 = vmatprep.subr.mxu0 0.0
    %214 = vmatpush1.xpose.msra.mxu0 %v209
    %215 = vmatprep.subr.mxu0 0.0
    %216 = vmatpush1.xpose.msra.mxu0 0.0
    %217 = vmatprep.subr.mxu0 0.0
    %218 = vmatpush1.xpose.msra.mxu0 0.0
    %219 = vmatprep.subr.mxu0 0.0
    %220 = vmatpush1.xpose.msra.mxu0 0.0
    %221 = vmatprep.subr.mxu0 0.0
    %222 = vmatpush1.xpose.msra.mxu0 0.0
    %223 = vmatprep.subr.mxu0 0.0
    %224 = vmatpush1.xpose.msra.mxu0 0.0
    %225 = vmatprep.subr.mxu0 0.0
    %226 = vmatpush1.xpose.msra.mxu0 0.0
    %227 = vmatprep.subr.mxu0 0.0
    %228 = vmatpush1.xpose.msra.mxu0 0.0
    %229 = vmatprep.subr.mxu0 0.0
    %230 = vmatpush1.xpose.msra.mxu0 0.0
    %231 = vmatprep.subr.mxu0 0.0
    %232 = vmatpush1.xpose.msra.mxu0 0.0
    %233 = vmatprep.subr.mxu0 0.0
    %234 = vmatpush1.xpose.msra.mxu0 0.0
    %235 = vmatprep.subr.mxu0 0.0
    %236 = vmatpush1.xpose.msra.mxu0 0.0
    %237 = vmatprep.subr.mxu0 0.0
    %238 = vmatpush1.xpose.msra.mxu0 0.0
    %239 = vmatprep.subr.mxu0 0.0
    %240 = vmatpush1.xpose.msra.mxu0 0.0
    %241 = vmatprep.subr.mxu0 0.0
    %242 = vmatpush1.xpose.msra.mxu0 0.0
    %243 = vmatprep.subr.mxu0 0.0
    %244 = vmatpush1.xpose.msra.mxu0 0.0
    %245 = vmatprep.subr.mxu0 0.0
    %246 = vmatpush1.xpose.msra.mxu0 0.0
    %247 = vmatprep.subr.mxu0 0.0
    %248 = vmatpush1.xpose.msra.mxu0 0.0
    %249 = vmatprep.subr.mxu0 0.0
    %250 = vmatpush1.xpose.msra.mxu0 0.0
    %251 = vmatprep.subr.mxu0 0.0
    %252 = vmatpush1.xpose.msra.mxu0 0.0
    %253 = vmatprep.subr.mxu0 0.0
    %254 = vmatpush1.xpose.msra.mxu0 0.0
    %255 = vmatprep.subr.mxu0 0.0
    %256 = vmatpush1.xpose.msra.mxu0 0.0
    %257 = vmatprep.subr.mxu0 0.0
    %258 = vmatpush1.xpose.msra.mxu0 0.0
    %259 = vmatprep.subr.mxu0 0.0
    %260 = vmatpush1.xpose.msra.mxu0 0.0
    %261 = vmatprep.subr.mxu0 0.0
    %262 = vmatpush1.xpose.msra.mxu0 0.0
    %263 = vmatprep.subr.mxu0 0.0
    %264 = vmatpush1.xpose.msra.mxu0 0.0
    %265 = vmatprep.subr.mxu0 0.0
    %266 = vmatpush1.xpose.msra.mxu0 0.0
    %267 = vmatprep.subr.mxu0 0.0
    %268 = vmatpush1.xpose.msra.mxu0 0.0
    %269 = vmatprep.subr.mxu0 0.0
    %270 = vmatpush1.xpose.msra.mxu0 0.0
    %271 = vmatprep.subr.mxu0 0.0
    %272 = vmatpush1.xpose.msra.mxu0 0.0
    %273 = vmatprep.subr.mxu0 0.0
    %274 = vmatpush1.xpose.msra.mxu0 0.0
    %275 = vmatprep.mubr.f32.mxu0 0.0
    %276 = vmatmul.mubr.f32.gmra.mrb[0].mxu0 %v203
    %v277 = vpop.f32.mrb[0].mxu0
    %v278 = vadd.f32 0.0, %v277
    %v279 = vpop.f32.mrb[0].mxu0
    %280 = vmatprep.mubr.f32.mxu0 0.0
    %281 = vmatmul.mubr.f32.gmra.mrb[0].mxu0 %v205
    %v282 = vpop.f32.mrb[0].mxu0
    %v283 = vadd.f32 0.0, %v282
    %v284 = vpop.f32.mrb[0].mxu0
    %285 = vdwg.mxu0
    %v286 = vmul.f32 %v278, %v69
    %v287 = vmul.f32 %v283, %v70
    %290 = vrot.lane.b32.xlu0 %v69, 112
    %v291 = vpop.permute.xlu0 %290
    %292 = vrot.lane.b32.xlu0 %v70, 112
    %v293 = vpop.permute.xlu0 %292
    %v296 = vadd.f32 %v286, %v291
    %v297 = vadd.f32 %v287, %v293
    %v298 = vmul.f32 %v296, 1.442695
    %v299 = vpow.pop %v298
    %v300 = vmul.f32 %v297, 1.442695
    %v301 = vpow.pop %v300
    %vm302 = vcmask 130048
    %v303 = vsel %vm302, %v299, 0.0
    %304 = vadd.xlane.f32.xlu0 %v303
    %v305 = vpop.xlane.xlu0 %304
    %v306 = vsel %vm302, %v301, 0.0
    %307 = vadd.xlane.f32.xlu0 %v306
    %v308 = vpop.xlane.xlu0 %307
    %v309 = vrcp.pop %v305
    %v310 = vrcp.pop %v308
    %v311 = vmul.f32 %v299, %v309
    %v312 = vmul.f32 %v301, %v310
    %313 = vrot.lane.b32.xlu0 %v188, 64
    %v314 = vpop.permute.xlu0 %313
    %315 = vrot.lane.b32.xlu0 %v193, 64
    %v316 = vpop.permute.xlu0 %315
    %v320 = vsel %vm302, %v311, 0
    %v323 = vsel %vm302, %v312, 0
    %325 = vmatprep.subr.mxu0 0.0
    %326 = vmatpush1.msra.mxu0 %v314
    %327 = vmatprep.subr.mxu0 0.0
    %328 = vmatpush1.msra.mxu0 %v316
    %329 = vmatprep.subr.mxu0 0.0
    %330 = vmatpush1.msra.mxu0 0.0
    %331 = vmatprep.subr.mxu0 0.0
    %332 = vmatpush1.msra.mxu0 0.0
    %333 = vmatprep.subr.mxu0 0.0
    %334 = vmatpush1.msra.mxu0 0.0
    %335 = vmatprep.subr.mxu0 0.0
    %336 = vmatpush1.msra.mxu0 0.0
    %337 = vmatprep.subr.mxu0 0.0
    %338 = vmatpush1.msra.mxu0 0.0
    %339 = vmatprep.subr.mxu0 0.0
    %340 = vmatpush1.msra.mxu0 0.0
    %341 = vmatprep.subr.mxu0 0.0
    %342 = vmatpush1.msra.mxu0 0.0
    %343 = vmatprep.subr.mxu0 0.0
    %344 = vmatpush1.msra.mxu0 0.0
    %345 = vmatprep.subr.mxu0 0.0
    %346 = vmatpush1.msra.mxu0 0.0
    %347 = vmatprep.subr.mxu0 0.0
    %348 = vmatpush1.msra.mxu0 0.0
    %349 = vmatprep.subr.mxu0 0.0
    %350 = vmatpush1.msra.mxu0 0.0
    %351 = vmatprep.subr.mxu0 0.0
    %352 = vmatpush1.msra.mxu0 0.0
    %353 = vmatprep.subr.mxu0 0.0
    %354 = vmatpush1.msra.mxu0 0.0
    %355 = vmatprep.subr.mxu0 0.0
    %356 = vmatpush1.msra.mxu0 0.0
    %357 = vmatprep.subr.mxu0 0.0
    %358 = vmatpush1.msra.mxu0 0.0
    %359 = vmatprep.subr.mxu0 0.0
    %360 = vmatpush1.msra.mxu0 0.0
    %361 = vmatprep.subr.mxu0 0.0
    %362 = vmatpush1.msra.mxu0 0.0
    %363 = vmatprep.subr.mxu0 0.0
    %364 = vmatpush1.msra.mxu0 0.0
    %365 = vmatprep.subr.mxu0 0.0
    %366 = vmatpush1.msra.mxu0 0.0
    %367 = vmatprep.subr.mxu0 0.0
    %368 = vmatpush1.msra.mxu0 0.0
    %369 = vmatprep.subr.mxu0 0.0
    %370 = vmatpush1.msra.mxu0 0.0
    %371 = vmatprep.subr.mxu0 0.0
    %372 = vmatpush1.msra.mxu0 0.0
    %373 = vmatprep.subr.mxu0 0.0
    %374 = vmatpush1.msra.mxu0 0.0
    %375 = vmatprep.subr.mxu0 0.0
    %376 = vmatpush1.msra.mxu0 0.0
    %377 = vmatprep.subr.mxu0 0.0
    %378 = vmatpush1.msra.mxu0 0.0
    %379 = vmatprep.subr.mxu0 0.0
    %380 = vmatpush1.msra.mxu0 0.0
    %381 = vmatprep.subr.mxu0 0.0
    %382 = vmatpush1.msra.mxu0 0.0
    %383 = vmatprep.subr.mxu0 0.0
    %384 = vmatpush1.msra.mxu0 0.0
    %385 = vmatprep.subr.mxu0 0.0
    %386 = vmatpush1.msra.mxu0 0.0
    %387 = vmatprep.subr.mxu0 0.0
    %388 = vmatpush1.msra.mxu0 0.0
    %389 = vmatprep.mubr.f32.mxu0 0.0
    %390 = vmatmul.mubr.f32.gmra.mrb[0].mxu0 %v320
    %v391 = vpop.f32.mrb[0].mxu0
    %v392 = vadd.f32 0.0, %v391
    %v393 = vpop.f32.mrb[0].mxu0
    %394 = vmatprep.mubr.f32.mxu0 0.0
    %395 = vmatmul.mubr.f32.gmra.mrb[0].mxu0 %v323
    %v396 = vpop.f32.mrb[0].mxu0
    %v397 = vadd.f32 0.0, %v396
    %v398 = vpop.f32.mrb[0].mxu0
    %399 = vdwg.mxu0
    %v400 = vld [vmem:[#allocation4] sm:$0xff]
    %401 = vrot.lane.b32.xlu0 %v188, 120
    %v402 = vpop.permute.xlu0 %401
    %403 = vrot.lane.b32.xlu0 %v193, 120
    %v404 = vpop.permute.xlu0 %403
    %405 = vrot.lane.b32.xlu0 %v188, 88
    %v406 = vpop.permute.xlu0 %405
    %407 = vrot.lane.b32.xlu0 %v193, 88
    %v408 = vpop.permute.xlu0 %407
    %v409 = vsel %vm202, %v402, 0
    %v411 = vsel %vm202, %v404, 0
    %v413 = vsel %vm202, %v406, 0
    %v415 = vsel %vm202, %v408, 0
    %417 = vmatprep.subr.mxu0 0.0
    %418 = vmatpush1.xpose.msra.mxu0 %v413
    %419 = vmatprep.subr.mxu0 0.0
    %420 = vmatpush1.xpose.msra.mxu0 %v415
    %421 = vmatprep.subr.mxu0 0.0
    %422 = vmatpush1.xpose.msra.mxu0 0.0
    %423 = vmatprep.subr.mxu0 0.0
    %424 = vmatpush1.xpose.msra.mxu0 0.0
    %425 = vmatprep.subr.mxu0 0.0
    %426 = vmatpush1.xpose.msra.mxu0 0.0
    %427 = vmatprep.subr.mxu0 0.0
    %428 = vmatpush1.xpose.msra.mxu0 0.0
    %429 = vmatprep.subr.mxu0 0.0
    %430 = vmatpush1.xpose.msra.mxu0 0.0
    %431 = vmatprep.subr.mxu0 0.0
    %432 = vmatpush1.xpose.msra.mxu0 0.0
    %433 = vmatprep.subr.mxu0 0.0
    %434 = vmatpush1.xpose.msra.mxu0 0.0
    %435 = vmatprep.subr.mxu0 0.0
    %436 = vmatpush1.xpose.msra.mxu0 0.0
    %437 = vmatprep.subr.mxu0 0.0
    %438 = vmatpush1.xpose.msra.mxu0 0.0
    %439 = vmatprep.subr.mxu0 0.0
    %440 = vmatpush1.xpose.msra.mxu0 0.0
    %441 = vmatprep.subr.mxu0 0.0
    %442 = vmatpush1.xpose.msra.mxu0 0.0
    %443 = vmatprep.subr.mxu0 0.0
    %444 = vmatpush1.xpose.msra.mxu0 0.0
    %445 = vmatprep.subr.mxu0 0.0
    %446 = vmatpush1.xpose.msra.mxu0 0.0
    %447 = vmatprep.subr.mxu0 0.0
    %448 = vmatpush1.xpose.msra.mxu0 0.0
    %449 = vmatprep.subr.mxu0 0.0
    %450 = vmatpush1.xpose.msra.mxu0 0.0
    %451 = vmatprep.subr.mxu0 0.0
    %452 = vmatpush1.xpose.msra.mxu0 0.0
    %453 = vmatprep.subr.mxu0 0.0
    %454 = vmatpush1.xpose.msra.mxu0 0.0
    %455 = vmatprep.subr.mxu0 0.0
    %456 = vmatpush1.xpose.msra.mxu0 0.0
    %457 = vmatprep.subr.mxu0 0.0
    %458 = vmatpush1.xpose.msra.mxu0 0.0
    %459 = vmatprep.subr.mxu0 0.0
    %460 = vmatpush1.xpose.msra.mxu0 0.0
    %461 = vmatprep.subr.mxu0 0.0
    %462 = vmatpush1.xpose.msra.mxu0 0.0
    %463 = vmatprep.subr.mxu0 0.0
    %464 = vmatpush1.xpose.msra.mxu0 0.0
    %465 = vmatprep.subr.mxu0 0.0
    %466 = vmatpush1.xpose.msra.mxu0 0.0
    %467 = vmatprep.subr.mxu0 0.0
    %468 = vmatpush1.xpose.msra.mxu0 0.0
    %469 = vmatprep.subr.mxu0 0.0
    %470 = vmatpush1.xpose.msra.mxu0 0.0
    %471 = vmatprep.subr.mxu0 0.0
    %472 = vmatpush1.xpose.msra.mxu0 0.0
    %473 = vmatprep.subr.mxu0 0.0
    %474 = vmatpush1.xpose.msra.mxu0 0.0
    %475 = vmatprep.subr.mxu0 0.0
    %476 = vmatpush1.xpose.msra.mxu0 0.0
    %477 = vmatprep.subr.mxu0 0.0
    %478 = vmatpush1.xpose.msra.mxu0 0.0
    %479 = vmatprep.subr.mxu0 0.0
    %480 = vmatpush1.xpose.msra.mxu0 0.0
    %481 = vmatprep.mubr.f32.mxu0 0.0
    %482 = vmatmul.mubr.f32.gmra.mrb[0].mxu0 %v409
    %v483 = vpop.f32.mrb[0].mxu0
    %v484 = vadd.f32 0.0, %v483
    %v485 = vpop.f32.mrb[0].mxu0
    %486 = vmatprep.mubr.f32.mxu0 0.0
    %487 = vmatmul.mubr.f32.gmra.mrb[0].mxu0 %v411
    %v488 = vpop.f32.mrb[0].mxu0
    %v489 = vadd.f32 0.0, %v488
    %v490 = vpop.f32.mrb[0].mxu0
    %491 = vdwg.mxu0
    %v492 = vmul.f32 %v484, %v69
    %v493 = vmul.f32 %v489, %v70
    %v494 = vadd.f32 %v492, %v291
    %v495 = vadd.f32 %v493, %v293
    %v496 = vmul.f32 %v494, 1.442695
    %v497 = vpow.pop %v496
    %v498 = vmul.f32 %v495, 1.442695
    %v499 = vpow.pop %v498
    %v500 = vsel %vm302, %v497, 0.0
    %501 = vadd.xlane.f32.xlu0 %v500
    %v502 = vpop.xlane.xlu0 %501
    %v503 = vsel %vm302, %v499, 0.0
    %504 = vadd.xlane.f32.xlu0 %v503
    %v505 = vpop.xlane.xlu0 %504
    %v506 = vrcp.pop %v502
    %v507 = vrcp.pop %v505
    %v508 = vmul.f32 %v497, %v506
    %v509 = vmul.f32 %v499, %v507
    %510 = vrot.lane.b32.xlu0 %v188, 56
    %v511 = vpop.permute.xlu0 %510
    %512 = vrot.lane.b32.xlu0 %v193, 56
    %v513 = vpop.permute.xlu0 %512
    %v517 = vsel %vm302, %v508, 0
    %v520 = vsel %vm302, %v509, 0
    %522 = vmatprep.subr.mxu0 0.0
    %523 = vmatpush1.msra.mxu0 %v511
    %524 = vmatprep.subr.mxu0 0.0
    %525 = vmatpush1.msra.mxu0 %v513
    %526 = vmatprep.subr.mxu0 0.0
    %527 = vmatpush1.msra.mxu0 0.0
    %528 = vmatprep.subr.mxu0 0.0
    %529 = vmatpush1.msra.mxu0 0.0
    %530 = vmatprep.subr.mxu0 0.0
    %531 = vmatpush1.msra.mxu0 0.0
    %532 = vmatprep.subr.mxu0 0.0
    %533 = vmatpush1.msra.mxu0 0.0
    %534 = vmatprep.subr.mxu0 0.0
    %535 = vmatpush1.msra.mxu0 0.0
    %536 = vmatprep.subr.mxu0 0.0
    %537 = vmatpush1.msra.mxu0 0.0
    %538 = vmatprep.subr.mxu0 0.0
    %539 = vmatpush1.msra.mxu0 0.0
    %540 = vmatprep.subr.mxu0 0.0
    %541 = vmatpush1.msra.mxu0 0.0
    %542 = vmatprep.subr.mxu0 0.0
    %543 = vmatpush1.msra.mxu0 0.0
    %544 = vmatprep.subr.mxu0 0.0
    %545 = vmatpush1.msra.mxu0 0.0
    %546 = vmatprep.subr.mxu0 0.0
    %547 = vmatpush1.msra.mxu0 0.0
    %548 = vmatprep.subr.mxu0 0.0
    %549 = vmatpush1.msra.mxu0 0.0
    %550 = vmatprep.subr.mxu0 0.0
    %551 = vmatpush1.msra.mxu0 0.0
    %552 = vmatprep.subr.mxu0 0.0
    %553 = vmatpush1.msra.mxu0 0.0
    %554 = vmatprep.subr.mxu0 0.0
    %555 = vmatpush1.msra.mxu0 0.0
    %556 = vmatprep.subr.mxu0 0.0
    %557 = vmatpush1.msra.mxu0 0.0
    %558 = vmatprep.subr.mxu0 0.0
    %559 = vmatpush1.msra.mxu0 0.0
    %560 = vmatprep.subr.mxu0 0.0
    %561 = vmatpush1.msra.mxu0 0.0
    %562 = vmatprep.subr.mxu0 0.0
    %563 = vmatpush1.msra.mxu0 0.0
    %564 = vmatprep.subr.mxu0 0.0
    %565 = vmatpush1.msra.mxu0 0.0
    %566 = vmatprep.subr.mxu0 0.0
    %567 = vmatpush1.msra.mxu0 0.0
    %568 = vmatprep.subr.mxu0 0.0
    %569 = vmatpush1.msra.mxu0 0.0
    %570 = vmatprep.subr.mxu0 0.0
    %571 = vmatpush1.msra.mxu0 0.0
    %572 = vmatprep.subr.mxu0 0.0
    %573 = vmatpush1.msra.mxu0 0.0
    %574 = vmatprep.subr.mxu0 0.0
    %575 = vmatpush1.msra.mxu0 0.0
    %576 = vmatprep.subr.mxu0 0.0
    %577 = vmatpush1.msra.mxu0 0.0
    %578 = vmatprep.subr.mxu0 0.0
    %579 = vmatpush1.msra.mxu0 0.0
    %580 = vmatprep.subr.mxu0 0.0
    %581 = vmatpush1.msra.mxu0 0.0
    %582 = vmatprep.subr.mxu0 0.0
    %583 = vmatpush1.msra.mxu0 0.0
    %584 = vmatprep.subr.mxu0 0.0
    %585 = vmatpush1.msra.mxu0 0.0
    %586 = vmatprep.mubr.f32.mxu0 0.0
    %587 = vmatmul.mubr.f32.gmra.mrb[0].mxu0 %v517
    %v588 = vpop.f32.mrb[0].mxu0
    %v589 = vadd.f32 0.0, %v588
    %v590 = vpop.f32.mrb[0].mxu0
    %591 = vmatprep.mubr.f32.mxu0 0.0
    %592 = vmatmul.mubr.f32.gmra.mrb[0].mxu0 %v520
    %v593 = vpop.f32.mrb[0].mxu0
    %v594 = vadd.f32 0.0, %v593
    %v595 = vpop.f32.mrb[0].mxu0
    %596 = vdwg.mxu0
    %v597 = vld [vmem:[#allocation4 + $0x8] sm:$0xff]
    %599 = vrot.lane.b32.xlu0 %v597, 32
    %v600 = vpop.permute.xlu0 %599
    %v603 = vsel %vm202, %v589, 0
    %v606 = vsel %vm202, %v594, 0
    %608 = vmatprep.subr.mxu0 0.0
    %609 = vmatpush1.msra.mxu0 %v600
    %610 = vmatprep.subr.mxu0 0.0
    %611 = vmatpush1.msra.mxu0 0.0
    %612 = vmatprep.subr.mxu0 0.0
    %613 = vmatpush1.msra.mxu0 0.0
    %614 = vmatprep.subr.mxu0 0.0
    %615 = vmatpush1.msra.mxu0 0.0
    %616 = vmatprep.subr.mxu0 0.0
    %617 = vmatpush1.msra.mxu0 0.0
    %618 = vmatprep.subr.mxu0 0.0
    %619 = vmatpush1.msra.mxu0 0.0
    %620 = vmatprep.subr.mxu0 0.0
    %621 = vmatpush1.msra.mxu0 0.0
    %622 = vmatprep.subr.mxu0 0.0
    %623 = vmatpush1.msra.mxu0 0.0
    %624 = vmatprep.subr.mxu0 0.0
    %625 = vmatpush1.msra.mxu0 0.0
    %626 = vmatprep.subr.mxu0 0.0
    %627 = vmatpush1.msra.mxu0 0.0
    %628 = vmatprep.subr.mxu0 0.0
    %629 = vmatpush1.msra.mxu0 0.0
    %630 = vmatprep.subr.mxu0 0.0
    %631 = vmatpush1.msra.mxu0 0.0
    %632 = vmatprep.subr.mxu0 0.0
    %633 = vmatpush1.msra.mxu0 0.0
    %634 = vmatprep.subr.mxu0 0.0
    %635 = vmatpush1.msra.mxu0 0.0
    %636 = vmatprep.subr.mxu0 0.0
    %637 = vmatpush1.msra.mxu0 0.0
    %638 = vmatprep.subr.mxu0 0.0
    %639 = vmatpush1.msra.mxu0 0.0
    %640 = vmatprep.subr.mxu0 0.0
    %641 = vmatpush1.msra.mxu0 0.0
    %642 = vmatprep.subr.mxu0 0.0
    %643 = vmatpush1.msra.mxu0 0.0
    %644 = vmatprep.subr.mxu0 0.0
    %645 = vmatpush1.msra.mxu0 0.0
    %646 = vmatprep.subr.mxu0 0.0
    %647 = vmatpush1.msra.mxu0 0.0
    %648 = vmatprep.subr.mxu0 0.0
    %649 = vmatpush1.msra.mxu0 0.0
    %650 = vmatprep.subr.mxu0 0.0
    %651 = vmatpush1.msra.mxu0 0.0
    %652 = vmatprep.subr.mxu0 0.0
    %653 = vmatpush1.msra.mxu0 0.0
    %654 = vmatprep.subr.mxu0 0.0
    %655 = vmatpush1.msra.mxu0 0.0
    %656 = vmatprep.subr.mxu0 0.0
    %657 = vmatpush1.msra.mxu0 0.0
    %658 = vmatprep.subr.mxu0 0.0
    %659 = vmatpush1.msra.mxu0 0.0
    %660 = vmatprep.subr.mxu0 0.0
    %661 = vmatpush1.msra.mxu0 0.0
    %662 = vmatprep.subr.mxu0 0.0
    %663 = vmatpush1.msra.mxu0 0.0
    %664 = vmatprep.subr.mxu0 0.0
    %665 = vmatpush1.msra.mxu0 0.0
    %666 = vmatprep.subr.mxu0 0.0
    %667 = vmatpush1.msra.mxu0 0.0
    %668 = vmatprep.subr.mxu0 0.0
    %669 = vmatpush1.msra.mxu0 0.0
    %670 = vmatprep.subr.mxu0 0.0
    %671 = vmatpush1.msra.mxu0 0.0
    %672 = vmatprep.mubr.f32.mxu0 0.0
    %673 = vmatmul.mubr.f32.gmra.mrb[0].mxu0 %v603
    %v674 = vpop.f32.mrb[0].mxu0
    %v675 = vadd.f32 0.0, %v674
    %v676 = vpop.f32.mrb[0].mxu0
    %677 = vmatprep.mubr.f32.mxu0 0.0
    %678 = vmatmul.mubr.f32.gmra.mrb[0].mxu0 %v606
    %v679 = vpop.f32.mrb[0].mxu0
    %v680 = vadd.f32 0.0, %v679
    %v681 = vpop.f32.mrb[0].mxu0
    %682 = vdwg.mxu0
    %684 = vrot.lane.b32.xlu0 %v400, 32
    %v685 = vpop.permute.xlu0 %684
    %v688 = vsel %vm202, %v392, 0
    %v691 = vsel %vm202, %v397, 0
    %693 = vmatprep.subr.mxu0 0.0
    %694 = vmatpush1.msra.mxu0 %v685
    %695 = vmatprep.subr.mxu0 0.0
    %696 = vmatpush1.msra.mxu0 0.0
    %697 = vmatprep.subr.mxu0 0.0
    %698 = vmatpush1.msra.mxu0 0.0
    %699 = vmatprep.subr.mxu0 0.0
    %700 = vmatpush1.msra.mxu0 0.0
    %701 = vmatprep.subr.mxu0 0.0
    %702 = vmatpush1.msra.mxu0 0.0
    %703 = vmatprep.subr.mxu0 0.0
    %704 = vmatpush1.msra.mxu0 0.0
    %705 = vmatprep.subr.mxu0 0.0
    %706 = vmatpush1.msra.mxu0 0.0
    %707 = vmatprep.subr.mxu0 0.0
    %708 = vmatpush1.msra.mxu0 0.0
    %709 = vmatprep.subr.mxu0 0.0
    %710 = vmatpush1.msra.mxu0 0.0
    %711 = vmatprep.subr.mxu0 0.0
    %712 = vmatpush1.msra.mxu0 0.0
    %713 = vmatprep.subr.mxu0 0.0
    %714 = vmatpush1.msra.mxu0 0.0
    %715 = vmatprep.subr.mxu0 0.0
    %716 = vmatpush1.msra.mxu0 0.0
    %717 = vmatprep.subr.mxu0 0.0
    %718 = vmatpush1.msra.mxu0 0.0
    %719 = vmatprep.subr.mxu0 0.0
    %720 = vmatpush1.msra.mxu0 0.0
    %721 = vmatprep.subr.mxu0 0.0
    %722 = vmatpush1.msra.mxu0 0.0
    %723 = vmatprep.subr.mxu0 0.0
    %724 = vmatpush1.msra.mxu0 0.0
    %725 = vmatprep.subr.mxu0 0.0
    %726 = vmatpush1.msra.mxu0 0.0
    %727 = vmatprep.subr.mxu0 0.0
    %728 = vmatpush1.msra.mxu0 0.0
    %729 = vmatprep.subr.mxu0 0.0
    %730 = vmatpush1.msra.mxu0 0.0
    %731 = vmatprep.subr.mxu0 0.0
    %732 = vmatpush1.msra.mxu0 0.0
    %733 = vmatprep.subr.mxu0 0.0
    %734 = vmatpush1.msra.mxu0 0.0
    %735 = vmatprep.subr.mxu0 0.0
    %736 = vmatpush1.msra.mxu0 0.0
    %737 = vmatprep.subr.mxu0 0.0
    %738 = vmatpush1.msra.mxu0 0.0
    %739 = vmatprep.subr.mxu0 0.0
    %740 = vmatpush1.msra.mxu0 0.0
    %741 = vmatprep.subr.mxu0 0.0
    %742 = vmatpush1.msra.mxu0 0.0
    %743 = vmatprep.subr.mxu0 0.0
    %744 = vmatpush1.msra.mxu0 0.0
    %745 = vmatprep.subr.mxu0 0.0
    %746 = vmatpush1.msra.mxu0 0.0
    %747 = vmatprep.subr.mxu0 0.0
    %748 = vmatpush1.msra.mxu0 0.0
    %749 = vmatprep.subr.mxu0 0.0
    %750 = vmatpush1.msra.mxu0 0.0
    %751 = vmatprep.subr.mxu0 0.0
    %752 = vmatpush1.msra.mxu0 0.0
    %753 = vmatprep.subr.mxu0 0.0
    %754 = vmatpush1.msra.mxu0 0.0
    %755 = vmatprep.subr.mxu0 0.0
    %756 = vmatpush1.msra.mxu0 0.0
    %757 = vmatprep.mubr.f32.mxu0 0.0
    %758 = vmatmul.mubr.f32.gmra.mrb[0].mxu0 %v688
    %v759 = vpop.f32.mrb[0].mxu0
    %v760 = vadd.f32 %v675, %v759
    %v761 = vpop.f32.mrb[0].mxu0
    %762 = vmatprep.mubr.f32.mxu0 0.0
    %763 = vmatmul.mubr.f32.gmra.mrb[0].mxu0 %v691
    %v764 = vpop.f32.mrb[0].mxu0
    %v765 = vadd.f32 %v680, %v764
    %v766 = vpop.f32.mrb[0].mxu0
    %767 = vdwg.mxu0
    %768 = vrot.lane.b32.xlu0 %v188, 112
    %v769 = vpop.permute.xlu0 %768
    %770 = vrot.lane.b32.xlu0 %v193, 112
    %v771 = vpop.permute.xlu0 %770
    %772 = vrot.lane.b32.xlu0 %v188, 80
    %v773 = vpop.permute.xlu0 %772
    %774 = vrot.lane.b32.xlu0 %v193, 80
    %v775 = vpop.permute.xlu0 %774
    %v776 = vsel %vm202, %v769, 0
    %v778 = vsel %vm202, %v771, 0
    %v780 = vsel %vm202, %v773, 0
    %v782 = vsel %vm202, %v775, 0
    %784 = vmatprep.subr.mxu0 0.0
    %785 = vmatpush1.xpose.msra.mxu0 %v780
    %786 = vmatprep.subr.mxu0 0.0
    %787 = vmatpush1.xpose.msra.mxu0 %v782
    %788 = vmatprep.subr.mxu0 0.0
    %789 = vmatpush1.xpose.msra.mxu0 0.0
    %790 = vmatprep.subr.mxu0 0.0
    %791 = vmatpush1.xpose.msra.mxu0 0.0
    %792 = vmatprep.subr.mxu0 0.0
    %793 = vmatpush1.xpose.msra.mxu0 0.0
    %794 = vmatprep.subr.mxu0 0.0
    %795 = vmatpush1.xpose.msra.mxu0 0.0
    %796 = vmatprep.subr.mxu0 0.0
    %797 = vmatpush1.xpose.msra.mxu0 0.0
    %798 = vmatprep.subr.mxu0 0.0
    %799 = vmatpush1.xpose.msra.mxu0 0.0
    %800 = vmatprep.subr.mxu0 0.0
    %801 = vmatpush1.xpose.msra.mxu0 0.0
    %802 = vmatprep.subr.mxu0 0.0
    %803 = vmatpush1.xpose.msra.mxu0 0.0
    %804 = vmatprep.subr.mxu0 0.0
    %805 = vmatpush1.xpose.msra.mxu0 0.0
    %806 = vmatprep.subr.mxu0 0.0
    %807 = vmatpush1.xpose.msra.mxu0 0.0
    %808 = vmatprep.subr.mxu0 0.0
    %809 = vmatpush1.xpose.msra.mxu0 0.0
    %810 = vmatprep.subr.mxu0 0.0
    %811 = vmatpush1.xpose.msra.mxu0 0.0
    %812 = vmatprep.subr.mxu0 0.0
    %813 = vmatpush1.xpose.msra.mxu0 0.0
    %814 = vmatprep.subr.mxu0 0.0
    %815 = vmatpush1.xpose.msra.mxu0 0.0
    %816 = vmatprep.subr.mxu0 0.0
    %817 = vmatpush1.xpose.msra.mxu0 0.0
    %818 = vmatprep.subr.mxu0 0.0
    %819 = vmatpush1.xpose.msra.mxu0 0.0
    %820 = vmatprep.subr.mxu0 0.0
    %821 = vmatpush1.xpose.msra.mxu0 0.0
    %822 = vmatprep.subr.mxu0 0.0
    %823 = vmatpush1.xpose.msra.mxu0 0.0
    %824 = vmatprep.subr.mxu0 0.0
    %825 = vmatpush1.xpose.msra.mxu0 0.0
    %826 = vmatprep.subr.mxu0 0.0
    %827 = vmatpush1.xpose.msra.mxu0 0.0
    %828 = vmatprep.subr.mxu0 0.0
    %829 = vmatpush1.xpose.msra.mxu0 0.0
    %830 = vmatprep.subr.mxu0 0.0
    %831 = vmatpush1.xpose.msra.mxu0 0.0
    %832 = vmatprep.subr.mxu0 0.0
    %833 = vmatpush1.xpose.msra.mxu0 0.0
    %834 = vmatprep.subr.mxu0 0.0
    %835 = vmatpush1.xpose.msra.mxu0 0.0
    %836 = vmatprep.subr.mxu0 0.0
    %837 = vmatpush1.xpose.msra.mxu0 0.0
    %838 = vmatprep.subr.mxu0 0.0
    %839 = vmatpush1.xpose.msra.mxu0 0.0
    %840 = vmatprep.subr.mxu0 0.0
    %841 = vmatpush1.xpose.msra.mxu0 0.0
    %842 = vmatprep.subr.mxu0 0.0
    %843 = vmatpush1.xpose.msra.mxu0 0.0
    %844 = vmatprep.subr.mxu0 0.0
    %845 = vmatpush1.xpose.msra.mxu0 0.0
    %846 = vmatprep.subr.mxu0 0.0
    %847 = vmatpush1.xpose.msra.mxu0 0.0
    %848 = vmatprep.mubr.f32.mxu0 0.0
    %849 = vmatmul.mubr.f32.gmra.mrb[0].mxu0 %v776
    %v850 = vpop.f32.mrb[0].mxu0
    %v851 = vadd.f32 0.0, %v850
    %v852 = vpop.f32.mrb[0].mxu0
    %853 = vmatprep.mubr.f32.mxu0 0.0
    %854 = vmatmul.mubr.f32.gmra.mrb[0].mxu0 %v778
    %v855 = vpop.f32.mrb[0].mxu0
    %v856 = vadd.f32 0.0, %v855
    %v857 = vpop.f32.mrb[0].mxu0
    %858 = vdwg.mxu0
    %v859 = vmul.f32 %v851, %v69
    %v860 = vmul.f32 %v856, %v70
    %v861 = vadd.f32 %v859, %v291
    %v862 = vadd.f32 %v860, %v293
    %v863 = vmul.f32 %v861, 1.442695
    %v864 = vpow.pop %v863
    %v865 = vmul.f32 %v862, 1.442695
    %v866 = vpow.pop %v865
    %v867 = vsel %vm302, %v864, 0.0
    %868 = vadd.xlane.f32.xlu0 %v867
    %v869 = vpop.xlane.xlu0 %868
    %v870 = vsel %vm302, %v866, 0.0
    %871 = vadd.xlane.f32.xlu0 %v870
    %v872 = vpop.xlane.xlu0 %871
    %v873 = vrcp.pop %v869
    %v874 = vrcp.pop %v872
    %v875 = vmul.f32 %v864, %v873
    %v876 = vmul.f32 %v866, %v874
    %877 = vrot.lane.b32.xlu0 %v188, 48
    %v878 = vpop.permute.xlu0 %877
    %879 = vrot.lane.b32.xlu0 %v193, 48
    %v880 = vpop.permute.xlu0 %879
    %v884 = vsel %vm302, %v875, 0
    %v887 = vsel %vm302, %v876, 0
    %889 = vmatprep.subr.mxu0 0.0
    %890 = vmatpush1.msra.mxu0 %v878
    %891 = vmatprep.subr.mxu0 0.0
    %892 = vmatpush1.msra.mxu0 %v880
    %893 = vmatprep.subr.mxu0 0.0
    %894 = vmatpush1.msra.mxu0 0.0
    %895 = vmatprep.subr.mxu0 0.0
    %896 = vmatpush1.msra.mxu0 0.0
    %897 = vmatprep.subr.mxu0 0.0
    %898 = vmatpush1.msra.mxu0 0.0
    %899 = vmatprep.subr.mxu0 0.0
    %900 = vmatpush1.msra.mxu0 0.0
    %901 = vmatprep.subr.mxu0 0.0
    %902 = vmatpush1.msra.mxu0 0.0
    %903 = vmatprep.subr.mxu0 0.0
    %904 = vmatpush1.msra.mxu0 0.0
    %905 = vmatprep.subr.mxu0 0.0
    %906 = vmatpush1.msra.mxu0 0.0
    %907 = vmatprep.subr.mxu0 0.0
    %908 = vmatpush1.msra.mxu0 0.0
    %909 = vmatprep.subr.mxu0 0.0
    %910 = vmatpush1.msra.mxu0 0.0
    %911 = vmatprep.subr.mxu0 0.0
    %912 = vmatpush1.msra.mxu0 0.0
    %913 = vmatprep.subr.mxu0 0.0
    %914 = vmatpush1.msra.mxu0 0.0
    %915 = vmatprep.subr.mxu0 0.0
    %916 = vmatpush1.msra.mxu0 0.0
    %917 = vmatprep.subr.mxu0 0.0
    %918 = vmatpush1.msra.mxu0 0.0
    %919 = vmatprep.subr.mxu0 0.0
    %920 = vmatpush1.msra.mxu0 0.0
    %921 = vmatprep.subr.mxu0 0.0
    %922 = vmatpush1.msra.mxu0 0.0
    %923 = vmatprep.subr.mxu0 0.0
    %924 = vmatpush1.msra.mxu0 0.0
    %925 = vmatprep.subr.mxu0 0.0
    %926 = vmatpush1.msra.mxu0 0.0
    %927 = vmatprep.subr.mxu0 0.0
    %928 = vmatpush1.msra.mxu0 0.0
    %929 = vmatprep.subr.mxu0 0.0
    %930 = vmatpush1.msra.mxu0 0.0
    %931 = vmatprep.subr.mxu0 0.0
    %932 = vmatpush1.msra.mxu0 0.0
    %933 = vmatprep.subr.mxu0 0.0
    %934 = vmatpush1.msra.mxu0 0.0
    %935 = vmatprep.subr.mxu0 0.0
    %936 = vmatpush1.msra.mxu0 0.0
    %937 = vmatprep.subr.mxu0 0.0
    %938 = vmatpush1.msra.mxu0 0.0
    %939 = vmatprep.subr.mxu0 0.0
    %940 = vmatpush1.msra.mxu0 0.0
    %941 = vmatprep.subr.mxu0 0.0
    %942 = vmatpush1.msra.mxu0 0.0
    %943 = vmatprep.subr.mxu0 0.0
    %944 = vmatpush1.msra.mxu0 0.0
    %945 = vmatprep.subr.mxu0 0.0
    %946 = vmatpush1.msra.mxu0 0.0
    %947 = vmatprep.subr.mxu0 0.0
    %948 = vmatpush1.msra.mxu0 0.0
    %949 = vmatprep.subr.mxu0 0.0
    %950 = vmatpush1.msra.mxu0 0.0
    %951 = vmatprep.subr.mxu0 0.0
    %952 = vmatpush1.msra.mxu0 0.0
    %953 = vmatprep.mubr.f32.mxu0 0.0
    %954 = vmatmul.mubr.f32.gmra.mrb[0].mxu0 %v884
    %v955 = vpop.f32.mrb[0].mxu0
    %v956 = vadd.f32 0.0, %v955
    %v957 = vpop.f32.mrb[0].mxu0
    %958 = vmatprep.mubr.f32.mxu0 0.0
    %959 = vmatmul.mubr.f32.gmra.mrb[0].mxu0 %v887
    %v960 = vpop.f32.mrb[0].mxu0
    %v961 = vadd.f32 0.0, %v960
    %v962 = vpop.f32.mrb[0].mxu0
    %963 = vdwg.mxu0
    %v964 = vld [vmem:[#allocation4 + $0x10] sm:$0xff]
    %966 = vrot.lane.b32.xlu0 %v964, 32
    %v967 = vpop.permute.xlu0 %966
    %v970 = vsel %vm202, %v956, 0
    %v973 = vsel %vm202, %v961, 0
    %975 = vmatprep.subr.mxu0 0.0
    %976 = vmatpush1.msra.mxu0 %v967
    %977 = vmatprep.subr.mxu0 0.0
    %978 = vmatpush1.msra.mxu0 0.0
    %979 = vmatprep.subr.mxu0 0.0
    %980 = vmatpush1.msra.mxu0 0.0
    %981 = vmatprep.subr.mxu0 0.0
    %982 = vmatpush1.msra.mxu0 0.0
    %983 = vmatprep.subr.mxu0 0.0
    %984 = vmatpush1.msra.mxu0 0.0
    %985 = vmatprep.subr.mxu0 0.0
    %986 = vmatpush1.msra.mxu0 0.0
    %987 = vmatprep.subr.mxu0 0.0
    %988 = vmatpush1.msra.mxu0 0.0
    %989 = vmatprep.subr.mxu0 0.0
    %990 = vmatpush1.msra.mxu0 0.0
    %991 = vmatprep.subr.mxu0 0.0
    %992 = vmatpush1.msra.mxu0 0.0
    %993 = vmatprep.subr.mxu0 0.0
    %994 = vmatpush1.msra.mxu0 0.0
    %995 = vmatprep.subr.mxu0 0.0
    %996 = vmatpush1.msra.mxu0 0.0
    %997 = vmatprep.subr.mxu0 0.0
    %998 = vmatpush1.msra.mxu0 0.0
    %999 = vmatprep.subr.mxu0 0.0
    %1000 = vmatpush1.msra.mxu0 0.0
    %1001 = vmatprep.subr.mxu0 0.0
    %1002 = vmatpush1.msra.mxu0 0.0
    %1003 = vmatprep.subr.mxu0 0.0
    %1004 = vmatpush1.msra.mxu0 0.0
    %1005 = vmatprep.subr.mxu0 0.0
    %1006 = vmatpush1.msra.mxu0 0.0
    %1007 = vmatprep.subr.mxu0 0.0
    %1008 = vmatpush1.msra.mxu0 0.0
    %1009 = vmatprep.subr.mxu0 0.0
    %1010 = vmatpush1.msra.mxu0 0.0
    %1011 = vmatprep.subr.mxu0 0.0
    %1012 = vmatpush1.msra.mxu0 0.0
    %1013 = vmatprep.subr.mxu0 0.0
    %1014 = vmatpush1.msra.mxu0 0.0
    %1015 = vmatprep.subr.mxu0 0.0
    %1016 = vmatpush1.msra.mxu0 0.0
    %1017 = vmatprep.subr.mxu0 0.0
    %1018 = vmatpush1.msra.mxu0 0.0
    %1019 = vmatprep.subr.mxu0 0.0
    %1020 = vmatpush1.msra.mxu0 0.0
    %1021 = vmatprep.subr.mxu0 0.0
    %1022 = vmatpush1.msra.mxu0 0.0
    %1023 = vmatprep.subr.mxu0 0.0
    %1024 = vmatpush1.msra.mxu0 0.0
    %1025 = vmatprep.subr.mxu0 0.0
    %1026 = vmatpush1.msra.mxu0 0.0
    %1027 = vmatprep.subr.mxu0 0.0
    %1028 = vmatpush1.msra.mxu0 0.0
    %1029 = vmatprep.subr.mxu0 0.0
    %1030 = vmatpush1.msra.mxu0 0.0
    %1031 = vmatprep.subr.mxu0 0.0
    %1032 = vmatpush1.msra.mxu0 0.0
    %1033 = vmatprep.subr.mxu0 0.0
    %1034 = vmatpush1.msra.mxu0 0.0
    %1035 = vmatprep.subr.mxu0 0.0
    %1036 = vmatpush1.msra.mxu0 0.0
    %1037 = vmatprep.subr.mxu0 0.0
    %1038 = vmatpush1.msra.mxu0 0.0
    %1039 = vmatprep.mubr.f32.mxu0 0.0
    %1040 = vmatmul.mubr.f32.gmra.mrb[0].mxu0 %v970
    %v1041 = vpop.f32.mrb[0].mxu0
    %v1042 = vadd.f32 0.0, %v1041
    %v1043 = vpop.f32.mrb[0].mxu0
    %1044 = vmatprep.mubr.f32.mxu0 0.0
    %1045 = vmatmul.mubr.f32.gmra.mrb[0].mxu0 %v973
    %v1046 = vpop.f32.mrb[0].mxu0
    %v1047 = vadd.f32 0.0, %v1046
    %v1048 = vpop.f32.mrb[0].mxu0
    %1049 = vdwg.mxu0
    %v1050 = vadd.f32 %v760, %v1042
    %v1051 = vadd.f32 %v765, %v1047
    %1052 = vrot.lane.b32.xlu0 %v188, 104
    %v1053 = vpop.permute.xlu0 %1052
    %1054 = vrot.lane.b32.xlu0 %v193, 104
    %v1055 = vpop.permute.xlu0 %1054
    %1056 = vrot.lane.b32.xlu0 %v188, 72
    %v1057 = vpop.permute.xlu0 %1056
    %1058 = vrot.lane.b32.xlu0 %v193, 72
    %v1059 = vpop.permute.xlu0 %1058
    %v1060 = vsel %vm202, %v1053, 0
    %v1062 = vsel %vm202, %v1055, 0
    %v1064 = vsel %vm202, %v1057, 0
    %v1066 = vsel %vm202, %v1059, 0
    %1068 = vmatprep.subr.mxu0 0.0
    %1069 = vmatpush1.xpose.msra.mxu0 %v1064
    %1070 = vmatprep.subr.mxu0 0.0
    %1071 = vmatpush1.xpose.msra.mxu0 %v1066
    %1072 = vmatprep.subr.mxu0 0.0
    %1073 = vmatpush1.xpose.msra.mxu0 0.0
    %1074 = vmatprep.subr.mxu0 0.0
    %1075 = vmatpush1.xpose.msra.mxu0 0.0
    %1076 = vmatprep.subr.mxu0 0.0
    %1077 = vmatpush1.xpose.msra.mxu0 0.0
    %1078 = vmatprep.subr.mxu0 0.0
    %1079 = vmatpush1.xpose.msra.mxu0 0.0
    %1080 = vmatprep.subr.mxu0 0.0
    %1081 = vmatpush1.xpose.msra.mxu0 0.0
    %1082 = vmatprep.subr.mxu0 0.0
    %1083 = vmatpush1.xpose.msra.mxu0 0.0
    %1084 = vmatprep.subr.mxu0 0.0
    %1085 = vmatpush1.xpose.msra.mxu0 0.0
    %1086 = vmatprep.subr.mxu0 0.0
    %1087 = vmatpush1.xpose.msra.mxu0 0.0
    %1088 = vmatprep.subr.mxu0 0.0
    %1089 = vmatpush1.xpose.msra.mxu0 0.0
    %1090 = vmatprep.subr.mxu0 0.0
    %1091 = vmatpush1.xpose.msra.mxu0 0.0
    %1092 = vmatprep.subr.mxu0 0.0
    %1093 = vmatpush1.xpose.msra.mxu0 0.0
    %1094 = vmatprep.subr.mxu0 0.0
    %1095 = vmatpush1.xpose.msra.mxu0 0.0
    %1096 = vmatprep.subr.mxu0 0.0
    %1097 = vmatpush1.xpose.msra.mxu0 0.0
    %1098 = vmatprep.subr.mxu0 0.0
    %1099 = vmatpush1.xpose.msra.mxu0 0.0
    %1100 = vmatprep.subr.mxu0 0.0
    %1101 = vmatpush1.xpose.msra.mxu0 0.0
    %1102 = vmatprep.subr.mxu0 0.0
    %1103 = vmatpush1.xpose.msra.mxu0 0.0
    %1104 = vmatprep.subr.mxu0 0.0
    %1105 = vmatpush1.xpose.msra.mxu0 0.0
    %1106 = vmatprep.subr.mxu0 0.0
    %1107 = vmatpush1.xpose.msra.mxu0 0.0
    %1108 = vmatprep.subr.mxu0 0.0
    %1109 = vmatpush1.xpose.msra.mxu0 0.0
    %1110 = vmatprep.subr.mxu0 0.0
    %1111 = vmatpush1.xpose.msra.mxu0 0.0
    %1112 = vmatprep.subr.mxu0 0.0
    %1113 = vmatpush1.xpose.msra.mxu0 0.0
    %1114 = vmatprep.subr.mxu0 0.0
    %1115 = vmatpush1.xpose.msra.mxu0 0.0
    %1116 = vmatprep.subr.mxu0 0.0
    %1117 = vmatpush1.xpose.msra.mxu0 0.0
    %1118 = vmatprep.subr.mxu0 0.0
    %1119 = vmatpush1.xpose.msra.mxu0 0.0
    %1120 = vmatprep.subr.mxu0 0.0
    %1121 = vmatpush1.xpose.msra.mxu0 0.0
    %1122 = vmatprep.subr.mxu0 0.0
    %1123 = vmatpush1.xpose.msra.mxu0 0.0
    %1124 = vmatprep.subr.mxu0 0.0
    %1125 = vmatpush1.xpose.msra.mxu0 0.0
    %1126 = vmatprep.subr.mxu0 0.0
    %1127 = vmatpush1.xpose.msra.mxu0 0.0
    %1128 = vmatprep.subr.mxu0 0.0
    %1129 = vmatpush1.xpose.msra.mxu0 0.0
    %1130 = vmatprep.subr.mxu0 0.0
    %1131 = vmatpush1.xpose.msra.mxu0 0.0
    %1132 = vmatprep.mubr.f32.mxu0 0.0
    %1133 = vmatmul.mubr.f32.gmra.mrb[0].mxu0 %v1060
    %v1134 = vpop.f32.mrb[0].mxu0
    %v1135 = vadd.f32 0.0, %v1134
    %v1136 = vpop.f32.mrb[0].mxu0
    %1137 = vmatprep.mubr.f32.mxu0 0.0
    %1138 = vmatmul.mubr.f32.gmra.mrb[0].mxu0 %v1062
    %v1139 = vpop.f32.mrb[0].mxu0
    %v1140 = vadd.f32 0.0, %v1139
    %v1141 = vpop.f32.mrb[0].mxu0
    %1142 = vdwg.mxu0
    %v1143 = vmul.f32 %v1135, %v69
    %v1144 = vmul.f32 %v1140, %v70
    %v1145 = vadd.f32 %v1143, %v291
    %v1146 = vadd.f32 %v1144, %v293
    %v1147 = vmul.f32 %v1145, 1.442695
    %v1148 = vpow.pop %v1147
    %v1149 = vmul.f32 %v1146, 1.442695
    %v1150 = vpow.pop %v1149
    %v1151 = vsel %vm302, %v1148, 0.0
    %1152 = vadd.xlane.f32.xlu0 %v1151
    %v1153 = vpop.xlane.xlu0 %1152
    %v1154 = vsel %vm302, %v1150, 0.0
    %1155 = vadd.xlane.f32.xlu0 %v1154
    %v1156 = vpop.xlane.xlu0 %1155
    %v1157 = vrcp.pop %v1153
    %v1158 = vrcp.pop %v1156
    %v1159 = vmul.f32 %v1148, %v1157
    %v1160 = vmul.f32 %v1150, %v1158
    %1161 = vrot.lane.b32.xlu0 %v188, 40
    %v1162 = vpop.permute.xlu0 %1161
    %1163 = vrot.lane.b32.xlu0 %v193, 40
    %v1164 = vpop.permute.xlu0 %1163
    %v1168 = vsel %vm302, %v1159, 0
    %v1171 = vsel %vm302, %v1160, 0
    %1173 = vmatprep.subr.mxu0 0.0
    %1174 = vmatpush1.msra.mxu0 %v1162
    %1175 = vmatprep.subr.mxu0 0.0
    %1176 = vmatpush1.msra.mxu0 %v1164
    %1177 = vmatprep.subr.mxu0 0.0
    %1178 = vmatpush1.msra.mxu0 0.0
    %1179 = vmatprep.subr.mxu0 0.0
    %1180 = vmatpush1.msra.mxu0 0.0
    %1181 = vmatprep.subr.mxu0 0.0
    %1182 = vmatpush1.msra.mxu0 0.0
    %1183 = vmatprep.subr.mxu0 0.0
    %1184 = vmatpush1.msra.mxu0 0.0
    %1185 = vmatprep.subr.mxu0 0.0
    %1186 = vmatpush1.msra.mxu0 0.0
    %1187 = vmatprep.subr.mxu0 0.0
    %1188 = vmatpush1.msra.mxu0 0.0
    %1189 = vmatprep.subr.mxu0 0.0
    %1190 = vmatpush1.msra.mxu0 0.0
    %1191 = vmatprep.subr.mxu0 0.0
    %1192 = vmatpush1.msra.mxu0 0.0
    %1193 = vmatprep.subr.mxu0 0.0
    %1194 = vmatpush1.msra.mxu0 0.0
    %1195 = vmatprep.subr.mxu0 0.0
    %1196 = vmatpush1.msra.mxu0 0.0
    %1197 = vmatprep.subr.mxu0 0.0
    %1198 = vmatpush1.msra.mxu0 0.0
    %1199 = vmatprep.subr.mxu0 0.0
    %1200 = vmatpush1.msra.mxu0 0.0
    %1201 = vmatprep.subr.mxu0 0.0
    %1202 = vmatpush1.msra.mxu0 0.0
    %1203 = vmatprep.subr.mxu0 0.0
    %1204 = vmatpush1.msra.mxu0 0.0
    %1205 = vmatprep.subr.mxu0 0.0
    %1206 = vmatpush1.msra.mxu0 0.0
    %1207 = vmatprep.subr.mxu0 0.0
    %1208 = vmatpush1.msra.mxu0 0.0
    %1209 = vmatprep.subr.mxu0 0.0
    %1210 = vmatpush1.msra.mxu0 0.0
    %1211 = vmatprep.subr.mxu0 0.0
    %1212 = vmatpush1.msra.mxu0 0.0
    %1213 = vmatprep.subr.mxu0 0.0
    %1214 = vmatpush1.msra.mxu0 0.0
    %1215 = vmatprep.subr.mxu0 0.0
    %1216 = vmatpush1.msra.mxu0 0.0
    %1217 = vmatprep.subr.mxu0 0.0
    %1218 = vmatpush1.msra.mxu0 0.0
    %1219 = vmatprep.subr.mxu0 0.0
    %1220 = vmatpush1.msra.mxu0 0.0
    %1221 = vmatprep.subr.mxu0 0.0
    %1222 = vmatpush1.msra.mxu0 0.0
    %1223 = vmatprep.subr.mxu0 0.0
    %1224 = vmatpush1.msra.mxu0 0.0
    %1225 = vmatprep.subr.mxu0 0.0
    %1226 = vmatpush1.msra.mxu0 0.0
    %1227 = vmatprep.subr.mxu0 0.0
    %1228 = vmatpush1.msra.mxu0 0.0
    %1229 = vmatprep.subr.mxu0 0.0
    %1230 = vmatpush1.msra.mxu0 0.0
    %1231 = vmatprep.subr.mxu0 0.0
    %1232 = vmatpush1.msra.mxu0 0.0
    %1233 = vmatprep.subr.mxu0 0.0
    %1234 = vmatpush1.msra.mxu0 0.0
    %1235 = vmatprep.subr.mxu0 0.0
    %1236 = vmatpush1.msra.mxu0 0.0
    %1237 = vmatprep.mubr.f32.mxu0 0.0
    %1238 = vmatmul.mubr.f32.gmra.mrb[0].mxu0 %v1168
    %v1239 = vpop.f32.mrb[0].mxu0
    %v1240 = vadd.f32 0.0, %v1239
    %v1241 = vpop.f32.mrb[0].mxu0
    %1242 = vmatprep.mubr.f32.mxu0 0.0
    %1243 = vmatmul.mubr.f32.gmra.mrb[0].mxu0 %v1171
    %v1244 = vpop.f32.mrb[0].mxu0
    %v1245 = vadd.f32 0.0, %v1244
    %v1246 = vpop.f32.mrb[0].mxu0
    %1247 = vdwg.mxu0
    %1249 = vrot.lane.b32.xlu0 %v44, 32
    %v1250 = vpop.permute.xlu0 %1249
    %v1253 = vsel %vm202, %v1240, 0
    %v1256 = vsel %vm202, %v1245, 0
    %1258 = vmatprep.subr.mxu0 0.0
    %1259 = vmatpush1.msra.mxu0 %v1250
    %1260 = vmatprep.subr.mxu0 0.0
    %1261 = vmatpush1.msra.mxu0 0.0
    %1262 = vmatprep.subr.mxu0 0.0
    %1263 = vmatpush1.msra.mxu0 0.0
    %1264 = vmatprep.subr.mxu0 0.0
    %1265 = vmatpush1.msra.mxu0 0.0
    %1266 = vmatprep.subr.mxu0 0.0
    %1267 = vmatpush1.msra.mxu0 0.0
    %1268 = vmatprep.subr.mxu0 0.0
    %1269 = vmatpush1.msra.mxu0 0.0
    %1270 = vmatprep.subr.mxu0 0.0
    %1271 = vmatpush1.msra.mxu0 0.0
    %1272 = vmatprep.subr.mxu0 0.0
    %1273 = vmatpush1.msra.mxu0 0.0
    %1274 = vmatprep.subr.mxu0 0.0
    %1275 = vmatpush1.msra.mxu0 0.0
    %1276 = vmatprep.subr.mxu0 0.0
    %1277 = vmatpush1.msra.mxu0 0.0
    %1278 = vmatprep.subr.mxu0 0.0
    %1279 = vmatpush1.msra.mxu0 0.0
    %1280 = vmatprep.subr.mxu0 0.0
    %1281 = vmatpush1.msra.mxu0 0.0
    %1282 = vmatprep.subr.mxu0 0.0
    %1283 = vmatpush1.msra.mxu0 0.0
    %1284 = vmatprep.subr.mxu0 0.0
    %1285 = vmatpush1.msra.mxu0 0.0
    %1286 = vmatprep.subr.mxu0 0.0
    %1287 = vmatpush1.msra.mxu0 0.0
    %1288 = vmatprep.subr.mxu0 0.0
    %1289 = vmatpush1.msra.mxu0 0.0
    %1290 = vmatprep.subr.mxu0 0.0
    %1291 = vmatpush1.msra.mxu0 0.0
    %1292 = vmatprep.subr.mxu0 0.0
    %1293 = vmatpush1.msra.mxu0 0.0
    %1294 = vmatprep.subr.mxu0 0.0
    %1295 = vmatpush1.msra.mxu0 0.0
    %1296 = vmatprep.subr.mxu0 0.0
    %1297 = vmatpush1.msra.mxu0 0.0
    %1298 = vmatprep.subr.mxu0 0.0
    %1299 = vmatpush1.msra.mxu0 0.0
    %1300 = vmatprep.subr.mxu0 0.0
    %1301 = vmatpush1.msra.mxu0 0.0
    %1302 = vmatprep.subr.mxu0 0.0
    %1303 = vmatpush1.msra.mxu0 0.0
    %1304 = vmatprep.subr.mxu0 0.0
    %1305 = vmatpush1.msra.mxu0 0.0
    %1306 = vmatprep.subr.mxu0 0.0
    %1307 = vmatpush1.msra.mxu0 0.0
    %1308 = vmatprep.subr.mxu0 0.0
    %1309 = vmatpush1.msra.mxu0 0.0
    %1310 = vmatprep.subr.mxu0 0.0
    %1311 = vmatpush1.msra.mxu0 0.0
    %1312 = vmatprep.subr.mxu0 0.0
    %1313 = vmatpush1.msra.mxu0 0.0
    %1314 = vmatprep.subr.mxu0 0.0
    %1315 = vmatpush1.msra.mxu0 0.0
    %1316 = vmatprep.subr.mxu0 0.0
    %1317 = vmatpush1.msra.mxu0 0.0
    %1318 = vmatprep.subr.mxu0 0.0
    %1319 = vmatpush1.msra.mxu0 0.0
    %1320 = vmatprep.subr.mxu0 0.0
    %1321 = vmatpush1.msra.mxu0 0.0
    %1322 = vmatprep.mubr.f32.mxu0 0.0
    %1323 = vmatmul.mubr.f32.gmra.mrb[0].mxu0 %v1253
    %v1324 = vpop.f32.mrb[0].mxu0
    %v1325 = vadd.f32 0.0, %v1324
    %v1326 = vpop.f32.mrb[0].mxu0
    %1327 = vmatprep.mubr.f32.mxu0 0.0
    %1328 = vmatmul.mubr.f32.gmra.mrb[0].mxu0 %v1256
    %v1329 = vpop.f32.mrb[0].mxu0
    %v1330 = vadd.f32 0.0, %v1329
    %v1331 = vpop.f32.mrb[0].mxu0
    %1332 = vdwg.mxu0
    %v1333 = vadd.f32 %v1050, %v1325
    %v1334 = vadd.f32 %v1051, %v1330
    %1336 = vrot.lane.b32.xlu0 %v114, 32
    %v1337 = vpop.permute.xlu0 %1336
    %v1339 = vadd.f32 %v1333, %v1337
    %v1340 = vadd.f32 %v1334, %v1337
    %v1341 = vadd.f32 %v39, %v1339
    %v1342 = vadd.f32 %v40, %v1340
    %v1343 = vsel %vm71, %v1341, 0.0
    %1344 = vadd.xlane.f32.xlu0 %v1343
    %v1345 = vpop.xlane.xlu0 %1344
    %v1346 = vsel %vm71, %v1342, 0.0
    %1347 = vadd.xlane.f32.xlu0 %v1346
    %v1348 = vpop.xlane.xlu0 %1347
    %v1349 = vmul.f32 %v1345, %v78
    %v1350 = vmul.f32 %v1348, %v78
    %v1351 = vsub.f32 %v1341, %v1349
    %v1352 = vsub.f32 %v1342, %v1350
    %v1353 = vmul.f32 %v1351, %v1351
    %v1354 = vmul.f32 %v1352, %v1352
    %v1355 = vsel %vm71, %v1353, 0.0
    %1356 = vadd.xlane.f32.xlu0 %v1355
    %v1357 = vpop.xlane.xlu0 %1356
    %v1358 = vsel %vm71, %v1354, 0.0
    %1359 = vadd.xlane.f32.xlu0 %v1358
    %v1360 = vpop.xlane.xlu0 %1359
    %v1361 = vmul.f32 %v1357, %v78
    %v1362 = vmul.f32 %v1360, %v78
    %v1363 = vadd.f32 %v1361, 1e-05
    %v1364 = vadd.f32 %v1362, 1e-05
    %v1365 = vrsqrt.pop %v1363
    %v1366 = vrsqrt.pop %v1364
    %v1367 = vmul.f32 %v1351, %v1365
    %v1368 = vmul.f32 %v1352, %v1366
    %1369 = vrot.lane.b32.xlu0 %v102, 64
    %v1370 = vpop.permute.xlu0 %1369
    %v1372 = vmul.f32 %v1367, %v1370
    %v1373 = vmul.f32 %v1368, %v1370
    %1374 = vrot.lane.b32.xlu0 %v102, 32
    %v1375 = vpop.permute.xlu0 %1374
    %v1377 = vadd.f32 %v1372, %v1375
    %v1378 = vadd.f32 %v1373, %v1375
    %v1379 = vlaneseq
    %v1380 = vshrl.u32 %v1379, 7
    %v1381 = vsub.s32 0, %v1380
    %v1382 = vrot.slane %v67, %v1381
    %v1384 = vsel %vm71, %v1377, 0
    %v1387 = vsel %vm71, %v1378, 0
    %1389 = vmatprep.subr.mxu0 0.0
    %1390 = vmatpush1.msra.mxu0 %v45
    %1391 = vmatprep.subr.mxu0 0.0
    %1392 = vmatpush1.msra.mxu0 %v46
    %1393 = vmatprep.subr.mxu0 0.0
    %1394 = vmatpush1.msra.mxu0 %v47
    %1395 = vmatprep.subr.mxu0 0.0
    %1396 = vmatpush1.msra.mxu0 %v48
    %1397 = vmatprep.subr.mxu0 0.0
    %1398 = vmatpush1.msra.mxu0 0.0
    %1399 = vmatprep.subr.mxu0 0.0
    %1400 = vmatpush1.msra.mxu0 0.0
    %1401 = vmatprep.subr.mxu0 0.0
    %1402 = vmatpush1.msra.mxu0 0.0
    %1403 = vmatprep.subr.mxu0 0.0
    %1404 = vmatpush1.msra.mxu0 0.0
    %1405 = vmatprep.subr.mxu0 0.0
    %1406 = vmatpush1.msra.mxu0 0.0
    %1407 = vmatprep.subr.mxu0 0.0
    %1408 = vmatpush1.msra.mxu0 0.0
    %1409 = vmatprep.subr.mxu0 0.0
    %1410 = vmatpush1.msra.mxu0 0.0
    %1411 = vmatprep.subr.mxu0 0.0
    %1412 = vmatpush1.msra.mxu0 0.0
    %1413 = vmatprep.subr.mxu0 0.0
    %1414 = vmatpush1.msra.mxu0 0.0
    %1415 = vmatprep.subr.mxu0 0.0
    %1416 = vmatpush1.msra.mxu0 0.0
    %1417 = vmatprep.subr.mxu0 0.0
    %1418 = vmatpush1.msra.mxu0 0.0
    %1419 = vmatprep.subr.mxu0 0.0
    %1420 = vmatpush1.msra.mxu0 0.0
    %1421 = vmatprep.subr.mxu0 0.0
    %1422 = vmatpush1.msra.mxu0 0.0
    %1423 = vmatprep.subr.mxu0 0.0
    %1424 = vmatpush1.msra.mxu0 0.0
    %1425 = vmatprep.subr.mxu0 0.0
    %1426 = vmatpush1.msra.mxu0 0.0
    %1427 = vmatprep.subr.mxu0 0.0
    %1428 = vmatpush1.msra.mxu0 0.0
    %1429 = vmatprep.subr.mxu0 0.0
    %1430 = vmatpush1.msra.mxu0 0.0
    %1431 = vmatprep.subr.mxu0 0.0
    %1432 = vmatpush1.msra.mxu0 0.0
    %1433 = vmatprep.subr.mxu0 0.0
    %1434 = vmatpush1.msra.mxu0 0.0
    %1435 = vmatprep.subr.mxu0 0.0
    %1436 = vmatpush1.msra.mxu0 0.0
    %1437 = vmatprep.subr.mxu0 0.0
    %1438 = vmatpush1.msra.mxu0 0.0
    %1439 = vmatprep.subr.mxu0 0.0
    %1440 = vmatpush1.msra.mxu0 0.0
    %1441 = vmatprep.subr.mxu0 0.0
    %1442 = vmatpush1.msra.mxu0 0.0
    %1443 = vmatprep.subr.mxu0 0.0
    %1444 = vmatpush1.msra.mxu0 0.0
    %1445 = vmatprep.subr.mxu0 0.0
    %1446 = vmatpush1.msra.mxu0 0.0
    %1447 = vmatprep.subr.mxu0 0.0
    %1448 = vmatpush1.msra.mxu0 0.0
    %1449 = vmatprep.subr.mxu0 0.0
    %1450 = vmatpush1.msra.mxu0 0.0
    %1451 = vmatprep.subr.mxu0 0.0
    %1452 = vmatpush1.msra.mxu0 0.0
    %1453 = vmatprep.mubr.f32.mxu0 0.0
    %1454 = vmatmul.mubr.f32.gmra.mrb[0].mxu0 %v1384
    %v1455 = vpop.f32.mrb[0].mxu0
    %v1456 = vadd.f32 %v1382, %v1455
    %v1457 = vpop.f32.mrb[0].mxu0
    %1458 = vmatprep.mubr.f32.mxu0 0.0
    %1459 = vmatmul.mubr.f32.gmra.mrb[0].mxu0 %v1387
    %v1460 = vpop.f32.mrb[0].mxu0
    %v1461 = vadd.f32 %v1382, %v1460
    %v1462 = vpop.f32.mrb[0].mxu0
    %1463 = vdwg.mxu0
    %v1464 = vmul.f32 %v1456, 0.5
    %v1465 = vmul.f32 %v1461, 0.5
    %v1466 = vmul.f32 %v1456, 0.044715
    %v1467 = vmul.f32 %v1461, 0.044715
    %v1468 = vmul.f32 %v1466, %v1456
    %v1469 = vmul.f32 %v1467, %v1461
    %v1470 = vmul.f32 %v1468, %v1456
    %v1471 = vmul.f32 %v1469, %v1461
    %v1472 = vadd.f32 %v1456, %v1470
    %v1473 = vadd.f32 %v1461, %v1471
    %v1474 = vmul.f32 %v1472, 0.7978846
    %v1475 = vmul.f32 %v1473, 0.7978846
    %v1476 = vtanh.pop %v1474
    %v1477 = vtanh.pop %v1475
    %v1478 = vadd.f32 %v1476, 1.0
    %v1479 = vadd.f32 %v1477, 1.0
    %v1480 = vmul.f32 %v1464, %v1478
    %v1481 = vmul.f32 %v1465, %v1479
    %v1482 = vlaneseq
    %v1483 = vshrl.u32 %v1482, 7
    %v1484 = vsub.s32 0, %v1483
    %v1485 = vrot.slane %v68, %v1484
    %1486 = vmatprep.subr.mxu0 0.0
    %1487 = vmatpush1.msra.mxu0 %v49
    %1488 = vmatprep.subr.mxu0 0.0
    %1489 = vmatpush1.msra.mxu0 %v50
    %1490 = vmatprep.subr.mxu0 0.0
    %1491 = vmatpush1.msra.mxu0 %v51
    %1492 = vmatprep.subr.mxu0 0.0
    %1493 = vmatpush1.msra.mxu0 %v52
    %1494 = vmatprep.subr.mxu0 0.0
    %1495 = vmatpush1.msra.mxu0 %v53
    %1496 = vmatprep.subr.mxu0 0.0
    %1497 = vmatpush1.msra.mxu0 %v54
    %1498 = vmatprep.subr.mxu0 0.0
    %1499 = vmatpush1.msra.mxu0 %v55
    %1500 = vmatprep.subr.mxu0 0.0
    %1501 = vmatpush1.msra.mxu0 %v56
    %1502 = vmatprep.subr.mxu0 0.0
    %1503 = vmatpush1.msra.mxu0 %v57
    %1504 = vmatprep.subr.mxu0 0.0
    %1505 = vmatpush1.msra.mxu0 %v58
    %1506 = vmatprep.subr.mxu0 0.0
    %1507 = vmatpush1.msra.mxu0 %v59
    %1508 = vmatprep.subr.mxu0 0.0
    %1509 = vmatpush1.msra.mxu0 %v60
    %1510 = vmatprep.subr.mxu0 0.0
    %1511 = vmatpush1.msra.mxu0 %v61
    %1512 = vmatprep.subr.mxu0 0.0
    %1513 = vmatpush1.msra.mxu0 %v62
    %1514 = vmatprep.subr.mxu0 0.0
    %1515 = vmatpush1.msra.mxu0 %v63
    %1516 = vmatprep.subr.mxu0 0.0
    %1517 = vmatpush1.msra.mxu0 %v64
    %1518 = vmatprep.subr.mxu0 0.0
    %1519 = vmatpush1.msra.mxu0 0.0
    %1520 = vmatprep.subr.mxu0 0.0
    %1521 = vmatpush1.msra.mxu0 0.0
    %1522 = vmatprep.subr.mxu0 0.0
    %1523 = vmatpush1.msra.mxu0 0.0
    %1524 = vmatprep.subr.mxu0 0.0
    %1525 = vmatpush1.msra.mxu0 0.0
    %1526 = vmatprep.subr.mxu0 0.0
    %1527 = vmatpush1.msra.mxu0 0.0
    %1528 = vmatprep.subr.mxu0 0.0
    %1529 = vmatpush1.msra.mxu0 0.0
    %1530 = vmatprep.subr.mxu0 0.0
    %1531 = vmatpush1.msra.mxu0 0.0
    %1532 = vmatprep.subr.mxu0 0.0
    %1533 = vmatpush1.msra.mxu0 0.0
    %1534 = vmatprep.subr.mxu0 0.0
    %1535 = vmatpush1.msra.mxu0 0.0
    %1536 = vmatprep.subr.mxu0 0.0
    %1537 = vmatpush1.msra.mxu0 0.0
    %1538 = vmatprep.subr.mxu0 0.0
    %1539 = vmatpush1.msra.mxu0 0.0
    %1540 = vmatprep.subr.mxu0 0.0
    %1541 = vmatpush1.msra.mxu0 0.0
    %1542 = vmatprep.subr.mxu0 0.0
    %1543 = vmatpush1.msra.mxu0 0.0
    %1544 = vmatprep.subr.mxu0 0.0
    %1545 = vmatpush1.msra.mxu0 0.0
    %1546 = vmatprep.subr.mxu0 0.0
    %1547 = vmatpush1.msra.mxu0 0.0
    %1548 = vmatprep.subr.mxu0 0.0
    %1549 = vmatpush1.msra.mxu0 0.0
    %1550 = vmatprep.mubr.f32.mxu0 0.0
    %1551 = vmatmul.mubr.f32.gmra.mrb[0].mxu0 %v1480
    %v1552 = vpop.f32.mrb[0].mxu0
    %v1553 = vadd.f32 %v1485, %v1552
    %v1554 = vpop.f32.mrb[0].mxu0
    %1555 = vmatprep.mubr.f32.mxu0 0.0
    %1556 = vmatmul.mubr.f32.gmra.mrb[0].mxu0 %v1481
    %v1557 = vpop.f32.mrb[0].mxu0
    %v1558 = vadd.f32 %v1485, %v1557
    %v1559 = vpop.f32.mrb[0].mxu0
    %1560 = vdwg.mxu0
    %v1561 = vadd.f32 %v1341, %v1553
    %v1562 = vadd.f32 %v1342, %v1558
    %v1563 = vsel %vm71, %v1561, %v188
    %v1564 = vsel %vm71, %v1562, %v193
    %vm1565 = vcmask 523264
    %v1566 = vsel %vm1565, %v1563, %v188
    %v1567 = vsel %vm1565, %v1564, %v193
    %vm1568 = vcmask 785408
    %v1569 = vsel %vm1568, %v1566, 0.0
    %v1570 = vsel %vm1568, %v1567, 0.0
    %1571 = vst [vmem:[%s2] sm:$0xff] %v1569
    %1572 = vst [vmem:[%s2 + $0x8] sm:$0xff] %v1570
    // Predicated region
    $region18: #{gpt2_block.1} parent=1 // pred_check
      _
    $region19: #{gpt2_block.1} parent=1 // pred_check_branch
      %1574 = sbr.rel (0) target = $region21
    $region20: #{gpt2_block.1} parent=1 // pred_region
      _
    $region21: #{gpt2_block.1} parent=1 // pred_fallthru
      _
    // Predicated region
    $region22: #{gpt2_block.1} parent=1 // pred_check
      _
    $region23: #{gpt2_block.1} parent=1 // pred_check_branch
      %1576 = sbr.rel (0) target = $region25
    $region24: #{gpt2_block.1} parent=1 // pred_region
      _
    $region25: #{gpt2_block.1} parent=1 // pred_fallthru
      _
    %1577 = vsyncpa [#allocation3], 1
    %1578 = vsyncpa [#allocation5], 1

</llo_original>
